<compile_context>
chip_gen: v6e
topology: v6e:2x2x1
jax: 0.10.0
libtpu: 0.0.40
codegen_flags: <defaults>
</compile_context>

<pallas_src>
import jax
import jax.numpy as jnp
from jax.experimental import pallas as pl
from jax.experimental.pallas import tpu as pltpu
from jax.scipy.special import gammaln, digamma  # reference check only

# ---------------- config (module __init__ arguments) ----------------
STATE_SIZE = 6
GOAL_SIZE = 2
IN_SIZE = STATE_SIZE + GOAL_SIZE
HIDDEN_SIZE = 32
ACTION_SIZE = 2
A = ACTION_SIZE
A_RANGE = 1.0
BATCH = 8

SMALL_BATCH = 512        # <= this: single grid step with full-array blocks
MAX_BATCH_TILE = 4096    # rows (lanes) per grid step for large batches
_LOGIT_EPS = 1e-6        # keeps log(v) / log1p(-v) finite at the boundary
_HALF_LOG_2PI = 0.9189385332046727
IO_DTYPE = jnp.float32   # TODO(synk): bf16 I/O on v5e/v6e once output tolerances allow


# ---------------- in-kernel special functions (EUP-friendly) ----------------
def _recip(x):
    """Approx reciprocal on the EUP + one Newton step (~f32 accurate, no VALU divide chain)."""
    r = pl.reciprocal(x, approx=True)
    return r * (2.0 - x * r)


def _lgamma(x):
    """log Gamma(x) for x >= ~1: shift argument by 6, then Stirling series.
    Shift product split into two 3-factor products: finite in f32 up to x ~ 7e12.
    """
    # TODO(synk): for x beyond ~7e12 a direct-Stirling branch would be needed.
    log_shift = (jnp.log(x * (x + 1.0) * (x + 2.0))
                 + jnp.log((x + 3.0) * (x + 4.0) * (x + 5.0)))
    z = x + 6.0
    inv = _recip(z)
    inv2 = inv * inv
    series = inv * (1.0 / 12.0 - inv2 * (1.0 / 360.0 - inv2 * (1.0 / 1260.0)))
    return (z - 0.5) * jnp.log(z) - z + _HALF_LOG_2PI + series - log_shift


def _digamma(x):
    """digamma(x) for x >= ~1: shift argument by 6, then asymptotic series."""
    rec = (_recip(x) + _recip(x + 1.0) + _recip(x + 2.0)
           + _recip(x + 3.0) + _recip(x + 4.0) + _recip(x + 5.0))
    z = x + 6.0
    inv = _recip(z)
    inv2 = inv * inv
    series = inv2 * (1.0 / 12.0 - inv2 * (1.0 / 120.0 - inv2 * (1.0 / 252.0)))
    return jnp.log(z) - 0.5 * inv - series - rec


def _softplus(z):
    return jnp.maximum(z, 0.0) + jnp.log1p(jnp.exp(-jnp.abs(z)))


def _log_prob(c0, c1, log_beta, v):
    # TODO(synk): torch.distributions.Beta.log_prob does not clip; the clip only
    # guards against -inf when a user-provided logit hits the [0,1] boundary.
    vc = jnp.clip(v, _LOGIT_EPS, 1.0 - _LOGIT_EPS)
    return (c0 - 1.0) * jnp.log(vc) + (c1 - 1.0) * jnp.log1p(-vc) - log_beta


def _mlp_beta_stats(x, w1, b1, w2, b2, w3, b3, w4a, b4a, w4b, b4b):
    """Fused MLP (transposed, batch on lanes) -> (c0, c1, log_beta, entropy).

    x: (IN_SIZE, tb); weights pre-transposed: w1 (H, IN), w2/w3 (H, H),
    w4a/w4b (A, H); biases as column vectors (H, 1) / (A, 1).
    All intermediates are (H, tb) / (A, tb): lane-dense.
    """
    h = jnp.maximum(jnp.dot(w1, x, preferred_element_type=jnp.float32) + b1, 0.0)
    h = jnp.maximum(jnp.dot(w2, h, preferred_element_type=jnp.float32) + b2, 0.0)
    h = jnp.maximum(jnp.dot(w3, h, preferred_element_type=jnp.float32) + b3, 0.0)
    c0 = _softplus(jnp.dot(w4a, h, preferred_element_type=jnp.float32) + b4a) + 1.05
    c1 = _softplus(jnp.dot(w4b, h, preferred_element_type=jnp.float32) + b4b) + 1.05

    log_beta = _lgamma(c0) + _lgamma(c1) - _lgamma(c0 + c1)
    entropy = (log_beta
               - (c0 - 1.0) * _digamma(c0)
               - (c1 - 1.0) * _digamma(c1)
               + (c0 + c1 - 2.0) * _digamma(c0 + c1))
    return c0, c1, log_beta, entropy


# ---------------- kernels (each emits ONE lane-dense slab) ----------------
def _greedy_kernel(x_ref, w1_ref, b1_ref, w2_ref, b2_ref, w3_ref, b3_ref,
                   w4a_ref, b4a_ref, w4b_ref, b4b_ref, out_ref):
    """Slab rows: [action(A), logit=mode(A), lprobs(A), negent(1)]."""
    c0, c1, log_beta, entropy = _mlp_beta_stats(
        x_ref[...], w1_ref[...], b1_ref[...], w2_ref[...], b2_ref[...],
        w3_ref[...], b3_ref[...], w4a_ref[...], b4a_ref[...],
        w4b_ref[...], b4b_ref[...])
    mode = (c0 - 1.0) * _recip(c0 + c1 - 2.0)
    out_ref[0:A, :] = 2.0 * (mode - 0.5) * A_RANGE
    out_ref[A:2 * A, :] = mode
    out_ref[2 * A:3 * A, :] = _log_prob(c0, c1, log_beta, mode)
    out_ref[3 * A:3 * A + 1, :] = -jnp.mean(entropy, axis=0, keepdims=True)


def _sample_stats_kernel(x_ref, w1_ref, b1_ref, w2_ref, b2_ref, w3_ref, b3_ref,
                         w4a_ref, b4a_ref, w4b_ref, b4b_ref, out_ref):
    """Slab rows: [c0(A), c1(A), log_beta(A), negent(1)] (sampling done in JAX)."""
    c0, c1, log_beta, entropy = _mlp_beta_stats(
        x_ref[...], w1_ref[...], b1_ref[...], w2_ref[...], b2_ref[...],
        w3_ref[...], b3_ref[...], w4a_ref[...], b4a_ref[...],
        w4b_ref[...], b4b_ref[...])
    out_ref[0:A, :] = c0
    out_ref[A:2 * A, :] = c1
    out_ref[2 * A:3 * A, :] = log_beta
    out_ref[3 * A:3 * A + 1, :] = -jnp.mean(entropy, axis=0, keepdims=True)


def _logit_kernel(x_ref, v_ref, w1_ref, b1_ref, w2_ref, b2_ref, w3_ref, b3_ref,
                  w4a_ref, b4a_ref, w4b_ref, b4b_ref, out_ref):
    """action_logit provided. Slab rows: [lprobs(A), action(A), negent(1)]."""
    c0, c1, log_beta, entropy = _mlp_beta_stats(
        x_ref[...], w1_ref[...], b1_ref[...], w2_ref[...], b2_ref[...],
        w3_ref[...], b3_ref[...], w4a_ref[...], b4a_ref[...],
        w4b_ref[...], b4b_ref[...])
    v = v_ref[...]
    out_ref[0:A, :] = _log_prob(c0, c1, log_beta, v)
    out_ref[A:2 * A, :] = 2.0 * (v - 0.5) * A_RANGE
    out_ref[2 * A:2 * A + 1, :] = -jnp.mean(entropy, axis=0, keepdims=True)


def _sample_finish_kernel(c0_ref, c1_ref, logb_ref, v_ref, out_ref):
    """Post-sample tail (clip/logs/scale) fused. Slab rows: [lprobs(A), action(A)]."""
    c0, c1, lb, v = c0_ref[...], c1_ref[...], logb_ref[...], v_ref[...]
    out_ref[0:A, :] = _log_prob(c0, c1, lb, v)
    out_ref[A:2 * A, :] = 2.0 * (v - 0.5) * A_RANGE


# ---------------- pallas_call plumbing ----------------
def _round_up(n, m):
    return pl.cdiv(n, m) * m


def _tile_and_pad(b):
    """(padded_batch, lane_tile). Small batches: one full-array block.
    Large batches: 128-aligned tile, >= 2 grid steps so v7x's two TCs both work."""
    if b <= SMALL_BATCH:
        return b, b
    tb = min(MAX_BATCH_TILE, _round_up(pl.cdiv(b, 2), 128))
    bp = _round_up(b, tb)
    return bp, tb


def _pad_lanes(x, bp):
    b = x.shape[-1]
    if bp == b:
        return x
    return jnp.pad(x, ((0, 0), (0, bp - b)))


def _lane_spec(rows, tb):
    return pl.BlockSpec((rows, tb), lambda i: (0, i))


def _const_spec(p):
    return pl.BlockSpec(p.shape, lambda i: (0, 0))


def _cost_estimate(bp):
    flops = 2 * bp * (IN_SIZE * HIDDEN_SIZE + 2 * HIDDEN_SIZE * HIDDEN_SIZE
                      + 2 * HIDDEN_SIZE * ACTION_SIZE) + 200 * bp * ACTION_SIZE
    transcendentals = 60 * bp * ACTION_SIZE
    weight_bytes = 4 * (HIDDEN_SIZE * (IN_SIZE + 2 * HIDDEN_SIZE + 2 * ACTION_SIZE)
                        + 3 * HIDDEN_SIZE + 2 * ACTION_SIZE)
    io_bytes = 4 * bp * (IN_SIZE + 4 * ACTION_SIZE + 1)
    return pl.CostEstimate(flops=flops, transcendentals=transcendentals,
                           bytes_accessed=weight_bytes + io_bytes)


def _slab_call(kernel, params, lane_inputs, out_rows, b, cost=None):
    """Run a kernel over lane-tiled (rows, batch) inputs, constant-broadcast
    params, and a single (out_rows, batch) lane-dense output slab."""
    bp, tb = _tile_and_pad(b)
    lane_inputs = [_pad_lanes(x.astype(IO_DTYPE), bp) for x in lane_inputs]
    in_specs = ([_lane_spec(x.shape[0], tb) for x in lane_inputs]
                + [_const_spec(p) for p in params])
    slab = pl.pallas_call(
        kernel,
        out_shape=jax.ShapeDtypeStruct((out_rows, bp), jnp.float32),
        grid=(bp // tb,),
        in_specs=in_specs,
        out_specs=_lane_spec(out_rows, tb),
        compiler_params=pltpu.CompilerParams(dimension_semantics=("parallel",)),
        cost_estimate=cost,
    )(*lane_inputs, *params)
    return slab[:, :b] if bp != b else slab


# ---------------- forward (mirrors StochasticPolicy.forward) ----------------
def stochastic_policy_forward(params, s, g, greedy=False, action_logit=None,
                              key=None):
    s = s.astype(jnp.float32)
    g = g.astype(jnp.float32)
    b = s.shape[0]
    # Single fused concat+transpose: (IN_SIZE, b), batch on lanes, layer-1 merged.
    xT = jnp.concatenate([s, g], axis=1).T
    cost = _cost_estimate(b)

    if action_logit is not None:
        vT = action_logit.astype(jnp.float32).T
        slab = _slab_call(_logit_kernel, params, [xT, vT], 2 * A + 1, b, cost)
        lprobs = slab[0:A].T
        action = slab[A:2 * A].T
        n_ent = slab[2 * A]                      # (b,), == -entropy.mean(dim=1)
        return lprobs, n_ent, action

    if greedy:
        slab = _slab_call(_greedy_kernel, params, [xT], 3 * A + 1, b, cost)
        action = slab[0:A].T
        logit = slab[A:2 * A].T
        lprobs = slab[2 * A:3 * A].T
        n_ent = jnp.mean(slab[3 * A])            # mean over batch of per-row -mean(entropy)
        return action, logit, lprobs, n_ent

    assert key is not None, "PRNG key required when sampling (greedy=False)"
    slab = _slab_call(_sample_stats_kernel, params, [xT], 3 * A + 1, b, cost)
    c0T, c1T, logbT = slab[0:A], slab[A:2 * A], slab[2 * A:3 * A]
    n_ent = jnp.mean(slab[3 * A])
    # TODO(synk): Beta sampling (gamma rejection sampler) stays in plain JAX.
    vT = jax.random.beta(key, c0T, c1T)
    fin = _slab_call(_sample_finish_kernel, (), [c0T, c1T, logbT, vT], 2 * A, b)
    lprobs = fin[0:A].T
    action = fin[A:2 * A].T
    return action, vT.T, lprobs, n_ent


# ---------------- params (PyTorch-style fan-in init) ----------------
def init_params(key):
    def linear(k, fan_in, fan_out):
        kw, kb = jax.random.split(k)
        bound = 1.0 / jnp.sqrt(fan_in)
        w = jax.random.uniform(kw, (fan_in, fan_out), jnp.float32, -bound, bound)
        b = jax.random.uniform(kb, (1, fan_out), jnp.float32, -bound, bound)
        return w, b

    k1, k2, k3, k4 = jax.random.split(key, 4)
    w1, b1 = linear(k1, IN_SIZE, HIDDEN_SIZE)
    w2, b2 = linear(k2, HIDDEN_SIZE, HIDDEN_SIZE)
    w3, b3 = linear(k3, HIDDEN_SIZE, HIDDEN_SIZE)
    w4, b4 = linear(k4, HIDDEN_SIZE, 2 * ACTION_SIZE)
    return (w1, b1, w2, b2, w3, b3, w4, b4)


def prepare_params(params):
    """One-time: transpose all weights for the batch-on-lanes layout and split
    the output head into c0/c1 heads (kills all in-kernel lane slicing)."""
    w1, b1, w2, b2, w3, b3, w4, b4 = params
    return (w1.T, b1.T,                       # (H, IN), (H, 1)
            w2.T, b2.T,                       # (H, H), (H, 1)
            w3.T, b3.T,
            w4[:, :A].T, b4[:, :A].T,         # (A, H), (A, 1)
            w4[:, A:].T, b4[:, A:].T)


# ---------------- plain-JAX reference (sanity check only) ----------------
def _reference_forward(raw_params, s, g, action_logit=None):
    w1, b1, w2, b2, w3, b3, w4, b4 = raw_params
    hp = jax.lax.Precision.HIGHEST
    x = jnp.concatenate([s, g], axis=1)
    h = jnp.maximum(jnp.dot(x, w1, precision=hp) + b1, 0.0)
    h = jnp.maximum(jnp.dot(h, w2, precision=hp) + b2, 0.0)
    h = jnp.maximum(jnp.dot(h, w3, precision=hp) + b3, 0.0)
    stats = jnp.logaddexp(jnp.dot(h, w4, precision=hp) + b4, 0.0) + 1.05
    c0, c1 = stats[:, :A], stats[:, A:]
    log_beta = gammaln(c0) + gammaln(c1) - gammaln(c0 + c1)
    entropy = (log_beta - (c0 - 1) * digamma(c0) - (c1 - 1) * digamma(c1)
               + (c0 + c1 - 2) * digamma(c0 + c1))
    mode = (c0 - 1.0) / (c0 + c1 - 2.0)

    def log_prob(v):
        vc = jnp.clip(v, _LOGIT_EPS, 1.0 - _LOGIT_EPS)
        return (c0 - 1) * jnp.log(vc) + (c1 - 1) * jnp.log1p(-vc) - log_beta

    if action_logit is None:   # greedy
        return (2.0 * (mode - 0.5) * A_RANGE, mode, log_prob(mode),
                -entropy.mean())
    return (log_prob(action_logit), -entropy.mean(axis=1),
            2.0 * (action_logit - 0.5) * A_RANGE)


if __name__ == "__main__":
    root = jax.random.PRNGKey(0)
    kp, ks, kg, ksample = jax.random.split(root, 4)
    raw_params = init_params(kp)
    params = prepare_params(raw_params)       # transposed/split once, off the hot path

    s = jax.random.normal(ks, (BATCH, STATE_SIZE), jnp.float32)
    g = jax.random.normal(kg, (BATCH, GOAL_SIZE), jnp.float32)

    fwd_greedy = jax.jit(lambda p, s_, g_: stochastic_policy_forward(p, s_, g_, greedy=True))
    fwd_sample = jax.jit(lambda p, s_, g_, k: stochastic_policy_forward(p, s_, g_, greedy=False, key=k))
    fwd_logit = jax.jit(lambda p, s_, g_, v: stochastic_policy_forward(p, s_, g_, action_logit=v))

    # 1) greedy path (deterministic): everything computed in-kernel
    action, logit, lprobs, n_ent = fwd_greedy(params, s, g)
    jax.block_until_ready((action, logit, lprobs, n_ent))

    # 2) sampled path (Beta sampling in JAX; pre/post math in Pallas)
    a_s, l_s, lp_s, ne_s = fwd_sample(params, s, g, ksample)
    jax.block_until_ready((a_s, l_s, lp_s, ne_s))

    # 3) action_logit-provided path
    given = jnp.clip(logit, 1e-4, 1.0 - 1e-4)
    lp2, ne2, act2 = fwd_logit(params, s, g, given)
    jax.block_until_ready((lp2, ne2, act2))

    # shape checks
    assert action.shape == (BATCH, ACTION_SIZE) and logit.shape == (BATCH, ACTION_SIZE)
    assert lprobs.shape == (BATCH, ACTION_SIZE) and n_ent.shape == ()
    assert a_s.shape == (BATCH, ACTION_SIZE) and l_s.shape == (BATCH, ACTION_SIZE)
    assert lp_s.shape == (BATCH, ACTION_SIZE) and ne_s.shape == ()
    assert lp2.shape == (BATCH, ACTION_SIZE)
    assert ne2.shape == (BATCH,) and act2.shape == (BATCH, ACTION_SIZE)

    # numerical sanity vs plain-JAX (gammaln/digamma) reference
    RTOL, ATOL = 2e-2, 5e-3
    ra, rl, rp, rn = _reference_forward(raw_params, s, g)
    assert jnp.allclose(action, ra, rtol=RTOL, atol=ATOL)
    assert jnp.allclose(logit, rl, rtol=RTOL, atol=ATOL)
    assert jnp.allclose(lprobs, rp, rtol=RTOL, atol=ATOL)
    assert jnp.allclose(n_ent, rn, rtol=RTOL, atol=ATOL)
    assert jnp.allclose(ne_s, rn, rtol=RTOL, atol=ATOL)

    rp2, rn2, ra2 = _reference_forward(raw_params, s, g, action_logit=given)
    assert jnp.allclose(lp2, rp2, rtol=RTOL, atol=ATOL)
    assert jnp.allclose(ne2, rn2, rtol=RTOL, atol=ATOL)
    assert jnp.allclose(act2, ra2, rtol=RTOL, atol=ATOL)

    # sampled path: logits valid, lprobs/action consistent with reference at the sample
    assert bool(jnp.all((l_s >= 0.0) & (l_s <= 1.0)))
    rps, _, ras = _reference_forward(raw_params, s, g, action_logit=l_s)
    assert jnp.allclose(lp_s, rps, rtol=RTOL, atol=ATOL)
    assert jnp.allclose(a_s, ras, rtol=RTOL, atol=ATOL)

    print("KERNEL_OK")
</pallas_src>

<mosaic_0001>
module attributes {stable_mosaic.version = 11 : i64} {
  func.func @_greedy_kernel(%arg0: i32, %arg1: memref<8x8xf32, #tpu.memory_space<vmem>>, %arg2: memref<32x8xf32, #tpu.memory_space<vmem>>, %arg3: memref<32x1xf32, #tpu.memory_space<vmem>>, %arg4: memref<32x32xf32, #tpu.memory_space<vmem>>, %arg5: memref<32x1xf32, #tpu.memory_space<vmem>>, %arg6: memref<32x32xf32, #tpu.memory_space<vmem>>, %arg7: memref<32x1xf32, #tpu.memory_space<vmem>>, %arg8: memref<2x32xf32, #tpu.memory_space<vmem>>, %arg9: memref<2x1xf32, #tpu.memory_space<vmem>>, %arg10: memref<2x32xf32, #tpu.memory_space<vmem>>, %arg11: memref<2x1xf32, #tpu.memory_space<vmem>>, %arg12: memref<7x8xf32, #tpu.memory_space<vmem>>) attributes {dimension_semantics = [#tpu.dimension_semantics<parallel>], iteration_bounds = array<i64: 1>, scalar_prefetch = 0 : i64, scratch_operands = 0 : i64, tpu.core_type = #tpu.core_type<tc>, window_params = [{transform_indices = @transform_0, window_bounds = array<i64: 8, 8>}, {pipeline_mode = #tpu.pipeline_mode<synchronous>, transform_indices = @transform_1, window_bounds = array<i64: 32, 8>}, {pipeline_mode = #tpu.pipeline_mode<synchronous>, transform_indices = @transform_2, window_bounds = array<i64: 32, 1>}, {pipeline_mode = #tpu.pipeline_mode<synchronous>, transform_indices = @transform_3, window_bounds = array<i64: 32, 32>}, {pipeline_mode = #tpu.pipeline_mode<synchronous>, transform_indices = @transform_4, window_bounds = array<i64: 32, 1>}, {pipeline_mode = #tpu.pipeline_mode<synchronous>, transform_indices = @transform_5, window_bounds = array<i64: 32, 32>}, {pipeline_mode = #tpu.pipeline_mode<synchronous>, transform_indices = @transform_6, window_bounds = array<i64: 32, 1>}, {pipeline_mode = #tpu.pipeline_mode<synchronous>, transform_indices = @transform_7, window_bounds = array<i64: 2, 32>}, {pipeline_mode = #tpu.pipeline_mode<synchronous>, transform_indices = @transform_8, window_bounds = array<i64: 2, 1>}, {pipeline_mode = #tpu.pipeline_mode<synchronous>, transform_indices = @transform_9, window_bounds = array<i64: 2, 32>}, {pipeline_mode = #tpu.pipeline_mode<synchronous>, transform_indices = @transform_10, window_bounds = array<i64: 2, 1>}, {transform_indices = @transform_11, window_bounds = array<i64: 7, 8>}]} {
    %c0 = arith.constant 0 : index
    %c0_0 = arith.constant 0 : index
    %0 = vector.load %arg1[%c0, %c0_0] : memref<8x8xf32, #tpu.memory_space<vmem>>, vector<8x8xf32>
    %c0_1 = arith.constant 0 : index
    %c0_2 = arith.constant 0 : index
    %1 = vector.load %arg2[%c0_1, %c0_2] : memref<32x8xf32, #tpu.memory_space<vmem>>, vector<32x8xf32>
    %c0_3 = arith.constant 0 : index
    %c0_4 = arith.constant 0 : index
    %2 = vector.load %arg3[%c0_3, %c0_4] : memref<32x1xf32, #tpu.memory_space<vmem>>, vector<32x1xf32>
    %c0_5 = arith.constant 0 : index
    %c0_6 = arith.constant 0 : index
    %3 = vector.load %arg4[%c0_5, %c0_6] : memref<32x32xf32, #tpu.memory_space<vmem>>, vector<32x32xf32>
    %c0_7 = arith.constant 0 : index
    %c0_8 = arith.constant 0 : index
    %4 = vector.load %arg5[%c0_7, %c0_8] : memref<32x1xf32, #tpu.memory_space<vmem>>, vector<32x1xf32>
    %c0_9 = arith.constant 0 : index
    %c0_10 = arith.constant 0 : index
    %5 = vector.load %arg6[%c0_9, %c0_10] : memref<32x32xf32, #tpu.memory_space<vmem>>, vector<32x32xf32>
    %c0_11 = arith.constant 0 : index
    %c0_12 = arith.constant 0 : index
    %6 = vector.load %arg7[%c0_11, %c0_12] : memref<32x1xf32, #tpu.memory_space<vmem>>, vector<32x1xf32>
    %c0_13 = arith.constant 0 : index
    %c0_14 = arith.constant 0 : index
    %7 = vector.load %arg8[%c0_13, %c0_14] : memref<2x32xf32, #tpu.memory_space<vmem>>, vector<2x32xf32>
    %c0_15 = arith.constant 0 : index
    %c0_16 = arith.constant 0 : index
    %8 = vector.load %arg9[%c0_15, %c0_16] : memref<2x1xf32, #tpu.memory_space<vmem>>, vector<2x1xf32>
    %c0_17 = arith.constant 0 : index
    %c0_18 = arith.constant 0 : index
    %9 = vector.load %arg10[%c0_17, %c0_18] : memref<2x32xf32, #tpu.memory_space<vmem>>, vector<2x32xf32>
    %c0_19 = arith.constant 0 : index
    %c0_20 = arith.constant 0 : index
    %10 = vector.load %arg11[%c0_19, %c0_20] : memref<2x1xf32, #tpu.memory_space<vmem>>, vector<2x1xf32>
    %cst = arith.constant dense<0.000000e+00> : vector<32x8xf32>
    %11 = tpu.matmul %1, %0, %cst {dimension_numbers = #tpu.dot_dimension_numbers<[1], [0], [0], [1], [0, 0, 1, 1], [], []>} : vector<32x8xf32>, vector<8x8xf32>, vector<32x8xf32> -> vector<32x8xf32>
    %12 = vector.broadcast %2 : vector<32x1xf32> to vector<32x8xf32>
    %13 = arith.addf %11, %12 : vector<32x8xf32>
    %cst_21 = arith.constant 0.000000e+00 : f32
    %14 = vector.broadcast %cst_21 : f32 to vector<32x8xf32>
    %15 = arith.maximumf %13, %14 : vector<32x8xf32>
    %cst_22 = arith.constant dense<0.000000e+00> : vector<32x8xf32>
    %16 = tpu.matmul %3, %15, %cst_22 {dimension_numbers = #tpu.dot_dimension_numbers<[1], [0], [0], [1], [0, 0, 1, 1], [], []>} : vector<32x32xf32>, vector<32x8xf32>, vector<32x8xf32> -> vector<32x8xf32>
    %17 = vector.broadcast %4 : vector<32x1xf32> to vector<32x8xf32>
    %18 = arith.addf %16, %17 : vector<32x8xf32>
    %cst_23 = arith.constant 0.000000e+00 : f32
    %19 = vector.broadcast %cst_23 : f32 to vector<32x8xf32>
    %20 = arith.maximumf %18, %19 : vector<32x8xf32>
    %cst_24 = arith.constant dense<0.000000e+00> : vector<32x8xf32>
    %21 = tpu.matmul %5, %20, %cst_24 {dimension_numbers = #tpu.dot_dimension_numbers<[1], [0], [0], [1], [0, 0, 1, 1], [], []>} : vector<32x32xf32>, vector<32x8xf32>, vector<32x8xf32> -> vector<32x8xf32>
    %22 = vector.broadcast %6 : vector<32x1xf32> to vector<32x8xf32>
    %23 = arith.addf %21, %22 : vector<32x8xf32>
    %cst_25 = arith.constant 0.000000e+00 : f32
    %24 = vector.broadcast %cst_25 : f32 to vector<32x8xf32>
    %25 = arith.maximumf %23, %24 : vector<32x8xf32>
    %cst_26 = arith.constant dense<0.000000e+00> : vector<2x8xf32>
    %26 = tpu.matmul %7, %25, %cst_26 {dimension_numbers = #tpu.dot_dimension_numbers<[1], [0], [0], [1], [0, 0, 1, 1], [], []>} : vector<2x32xf32>, vector<32x8xf32>, vector<2x8xf32> -> vector<2x8xf32>
    %27 = vector.broadcast %8 : vector<2x1xf32> to vector<2x8xf32>
    %28 = arith.addf %26, %27 : vector<2x8xf32>
    %cst_27 = arith.constant 0.000000e+00 : f32
    %29 = vector.broadcast %cst_27 : f32 to vector<2x8xf32>
    %30 = arith.maximumf %28, %29 : vector<2x8xf32>
    %31 = math.absf %28 : vector<2x8xf32>
    %cst_28 = arith.constant 0.000000e+00 : f32
    %32 = vector.broadcast %cst_28 : f32 to vector<2x8xf32>
    %33 = arith.subf %32, %31 : vector<2x8xf32>
    %34 = math.exp %33 : vector<2x8xf32>
    %35 = math.log1p %34 : vector<2x8xf32>
    %36 = arith.addf %30, %35 : vector<2x8xf32>
    %cst_29 = arith.constant 1.050000e+00 : f32
    %37 = vector.broadcast %cst_29 : f32 to vector<2x8xf32>
    %38 = arith.addf %36, %37 : vector<2x8xf32>
    %cst_30 = arith.constant dense<0.000000e+00> : vector<2x8xf32>
    %39 = tpu.matmul %9, %25, %cst_30 {dimension_numbers = #tpu.dot_dimension_numbers<[1], [0], [0], [1], [0, 0, 1, 1], [], []>} : vector<2x32xf32>, vector<32x8xf32>, vector<2x8xf32> -> vector<2x8xf32>
    %40 = vector.broadcast %10 : vector<2x1xf32> to vector<2x8xf32>
    %41 = arith.addf %39, %40 : vector<2x8xf32>
    %cst_31 = arith.constant 0.000000e+00 : f32
    %42 = vector.broadcast %cst_31 : f32 to vector<2x8xf32>
    %43 = arith.maximumf %41, %42 : vector<2x8xf32>
    %44 = math.absf %41 : vector<2x8xf32>
    %cst_32 = arith.constant 0.000000e+00 : f32
    %45 = vector.broadcast %cst_32 : f32 to vector<2x8xf32>
    %46 = arith.subf %45, %44 : vector<2x8xf32>
    %47 = math.exp %46 : vector<2x8xf32>
    %48 = math.log1p %47 : vector<2x8xf32>
    %49 = arith.addf %43, %48 : vector<2x8xf32>
    %cst_33 = arith.constant 1.050000e+00 : f32
    %50 = vector.broadcast %cst_33 : f32 to vector<2x8xf32>
    %51 = arith.addf %49, %50 : vector<2x8xf32>
    %cst_34 = arith.constant 1.000000e+00 : f32
    %52 = vector.broadcast %cst_34 : f32 to vector<2x8xf32>
    %53 = arith.addf %38, %52 : vector<2x8xf32>
    %54 = arith.mulf %38, %53 : vector<2x8xf32>
    %cst_35 = arith.constant 2.000000e+00 : f32
    %55 = vector.broadcast %cst_35 : f32 to vector<2x8xf32>
    %56 = arith.addf %38, %55 : vector<2x8xf32>
    %57 = arith.mulf %54, %56 : vector<2x8xf32>
    %58 = math.log %57 : vector<2x8xf32>
    %cst_36 = arith.constant 3.000000e+00 : f32
    %59 = vector.broadcast %cst_36 : f32 to vector<2x8xf32>
    %60 = arith.addf %38, %59 : vector<2x8xf32>
    %cst_37 = arith.constant 4.000000e+00 : f32
    %61 = vector.broadcast %cst_37 : f32 to vector<2x8xf32>
    %62 = arith.addf %38, %61 : vector<2x8xf32>
    %63 = arith.mulf %60, %62 : vector<2x8xf32>
    %cst_38 = arith.constant 5.000000e+00 : f32
    %64 = vector.broadcast %cst_38 : f32 to vector<2x8xf32>
    %65 = arith.addf %38, %64 : vector<2x8xf32>
    %66 = arith.mulf %63, %65 : vector<2x8xf32>
    %67 = math.log %66 : vector<2x8xf32>
    %68 = arith.addf %58, %67 : vector<2x8xf32>
    %cst_39 = arith.constant 6.000000e+00 : f32
    %69 = vector.broadcast %cst_39 : f32 to vector<2x8xf32>
    %70 = arith.addf %38, %69 : vector<2x8xf32>
    %71 = tpu.reciprocal %70 {approx = true} : vector<2x8xf32> -> vector<2x8xf32>
    %72 = arith.mulf %70, %71 : vector<2x8xf32>
    %cst_40 = arith.constant 2.000000e+00 : f32
    %73 = vector.broadcast %cst_40 : f32 to vector<2x8xf32>
    %74 = arith.subf %73, %72 : vector<2x8xf32>
    %75 = arith.mulf %71, %74 : vector<2x8xf32>
    %76 = arith.mulf %75, %75 : vector<2x8xf32>
    %cst_41 = arith.constant 7.93650805E-4 : f32
    %77 = vector.broadcast %cst_41 : f32 to vector<2x8xf32>
    %78 = arith.mulf %76, %77 : vector<2x8xf32>
    %cst_42 = arith.constant 0.00277777785 : f32
    %79 = vector.broadcast %cst_42 : f32 to vector<2x8xf32>
    %80 = arith.subf %79, %78 : vector<2x8xf32>
    %81 = arith.mulf %76, %80 : vector<2x8xf32>
    %cst_43 = arith.constant 0.0833333358 : f32
    %82 = vector.broadcast %cst_43 : f32 to vector<2x8xf32>
    %83 = arith.subf %82, %81 : vector<2x8xf32>
    %84 = arith.mulf %75, %83 : vector<2x8xf32>
    %cst_44 = arith.constant 5.000000e-01 : f32
    %85 = vector.broadcast %cst_44 : f32 to vector<2x8xf32>
    %86 = arith.subf %70, %85 : vector<2x8xf32>
    %87 = math.log %70 : vector<2x8xf32>
    %88 = arith.mulf %86, %87 : vector<2x8xf32>
    %89 = arith.subf %88, %70 : vector<2x8xf32>
    %cst_45 = arith.constant 0.918938517 : f32
    %90 = vector.broadcast %cst_45 : f32 to vector<2x8xf32>
    %91 = arith.addf %89, %90 : vector<2x8xf32>
    %92 = arith.addf %91, %84 : vector<2x8xf32>
    %93 = arith.subf %92, %68 : vector<2x8xf32>
    %cst_46 = arith.constant 1.000000e+00 : f32
    %94 = vector.broadcast %cst_46 : f32 to vector<2x8xf32>
    %95 = arith.addf %51, %94 : vector<2x8xf32>
    %96 = arith.mulf %51, %95 : vector<2x8xf32>
    %cst_47 = arith.constant 2.000000e+00 : f32
    %97 = vector.broadcast %cst_47 : f32 to vector<2x8xf32>
    %98 = arith.addf %51, %97 : vector<2x8xf32>
    %99 = arith.mulf %96, %98 : vector<2x8xf32>
    %100 = math.log %99 : vector<2x8xf32>
    %cst_48 = arith.constant 3.000000e+00 : f32
    %101 = vector.broadcast %cst_48 : f32 to vector<2x8xf32>
    %102 = arith.addf %51, %101 : vector<2x8xf32>
    %cst_49 = arith.constant 4.000000e+00 : f32
    %103 = vector.broadcast %cst_49 : f32 to vector<2x8xf32>
    %104 = arith.addf %51, %103 : vector<2x8xf32>
    %105 = arith.mulf %102, %104 : vector<2x8xf32>
    %cst_50 = arith.constant 5.000000e+00 : f32
    %106 = vector.broadcast %cst_50 : f32 to vector<2x8xf32>
    %107 = arith.addf %51, %106 : vector<2x8xf32>
    %108 = arith.mulf %105, %107 : vector<2x8xf32>
    %109 = math.log %108 : vector<2x8xf32>
    %110 = arith.addf %100, %109 : vector<2x8xf32>
    %cst_51 = arith.constant 6.000000e+00 : f32
    %111 = vector.broadcast %cst_51 : f32 to vector<2x8xf32>
    %112 = arith.addf %51, %111 : vector<2x8xf32>
    %113 = tpu.reciprocal %112 {approx = true} : vector<2x8xf32> -> vector<2x8xf32>
    %114 = arith.mulf %112, %113 : vector<2x8xf32>
    %cst_52 = arith.constant 2.000000e+00 : f32
    %115 = vector.broadcast %cst_52 : f32 to vector<2x8xf32>
    %116 = arith.subf %115, %114 : vector<2x8xf32>
    %117 = arith.mulf %113, %116 : vector<2x8xf32>
    %118 = arith.mulf %117, %117 : vector<2x8xf32>
    %cst_53 = arith.constant 7.93650805E-4 : f32
    %119 = vector.broadcast %cst_53 : f32 to vector<2x8xf32>
    %120 = arith.mulf %118, %119 : vector<2x8xf32>
    %cst_54 = arith.constant 0.00277777785 : f32
    %121 = vector.broadcast %cst_54 : f32 to vector<2x8xf32>
    %122 = arith.subf %121, %120 : vector<2x8xf32>
    %123 = arith.mulf %118, %122 : vector<2x8xf32>
    %cst_55 = arith.constant 0.0833333358 : f32
    %124 = vector.broadcast %cst_55 : f32 to vector<2x8xf32>
    %125 = arith.subf %124, %123 : vector<2x8xf32>
    %126 = arith.mulf %117, %125 : vector<2x8xf32>
    %cst_56 = arith.constant 5.000000e-01 : f32
    %127 = vector.broadcast %cst_56 : f32 to vector<2x8xf32>
    %128 = arith.subf %112, %127 : vector<2x8xf32>
    %129 = math.log %112 : vector<2x8xf32>
    %130 = arith.mulf %128, %129 : vector<2x8xf32>
    %131 = arith.subf %130, %112 : vector<2x8xf32>
    %cst_57 = arith.constant 0.918938517 : f32
    %132 = vector.broadcast %cst_57 : f32 to vector<2x8xf32>
    %133 = arith.addf %131, %132 : vector<2x8xf32>
    %134 = arith.addf %133, %126 : vector<2x8xf32>
    %135 = arith.subf %134, %110 : vector<2x8xf32>
    %136 = arith.addf %93, %135 : vector<2x8xf32>
    %137 = arith.addf %38, %51 : vector<2x8xf32>
    %cst_58 = arith.constant 1.000000e+00 : f32
    %138 = vector.broadcast %cst_58 : f32 to vector<2x8xf32>
    %139 = arith.addf %137, %138 : vector<2x8xf32>
    %140 = arith.mulf %137, %139 : vector<2x8xf32>
    %cst_59 = arith.constant 2.000000e+00 : f32
    %141 = vector.broadcast %cst_59 : f32 to vector<2x8xf32>
    %142 = arith.addf %137, %141 : vector<2x8xf32>
    %143 = arith.mulf %140, %142 : vector<2x8xf32>
    %144 = math.log %143 : vector<2x8xf32>
    %cst_60 = arith.constant 3.000000e+00 : f32
    %145 = vector.broadcast %cst_60 : f32 to vector<2x8xf32>
    %146 = arith.addf %137, %145 : vector<2x8xf32>
    %cst_61 = arith.constant 4.000000e+00 : f32
    %147 = vector.broadcast %cst_61 : f32 to vector<2x8xf32>
    %148 = arith.addf %137, %147 : vector<2x8xf32>
    %149 = arith.mulf %146, %148 : vector<2x8xf32>
    %cst_62 = arith.constant 5.000000e+00 : f32
    %150 = vector.broadcast %cst_62 : f32 to vector<2x8xf32>
    %151 = arith.addf %137, %150 : vector<2x8xf32>
    %152 = arith.mulf %149, %151 : vector<2x8xf32>
    %153 = math.log %152 : vector<2x8xf32>
    %154 = arith.addf %144, %153 : vector<2x8xf32>
    %cst_63 = arith.constant 6.000000e+00 : f32
    %155 = vector.broadcast %cst_63 : f32 to vector<2x8xf32>
    %156 = arith.addf %137, %155 : vector<2x8xf32>
    %157 = tpu.reciprocal %156 {approx = true} : vector<2x8xf32> -> vector<2x8xf32>
    %158 = arith.mulf %156, %157 : vector<2x8xf32>
    %cst_64 = arith.constant 2.000000e+00 : f32
    %159 = vector.broadcast %cst_64 : f32 to vector<2x8xf32>
    %160 = arith.subf %159, %158 : vector<2x8xf32>
    %161 = arith.mulf %157, %160 : vector<2x8xf32>
    %162 = arith.mulf %161, %161 : vector<2x8xf32>
    %cst_65 = arith.constant 7.93650805E-4 : f32
    %163 = vector.broadcast %cst_65 : f32 to vector<2x8xf32>
    %164 = arith.mulf %162, %163 : vector<2x8xf32>
    %cst_66 = arith.constant 0.00277777785 : f32
    %165 = vector.broadcast %cst_66 : f32 to vector<2x8xf32>
    %166 = arith.subf %165, %164 : vector<2x8xf32>
    %167 = arith.mulf %162, %166 : vector<2x8xf32>
    %cst_67 = arith.constant 0.0833333358 : f32
    %168 = vector.broadcast %cst_67 : f32 to vector<2x8xf32>
    %169 = arith.subf %168, %167 : vector<2x8xf32>
    %170 = arith.mulf %161, %169 : vector<2x8xf32>
    %cst_68 = arith.constant 5.000000e-01 : f32
    %171 = vector.broadcast %cst_68 : f32 to vector<2x8xf32>
    %172 = arith.subf %156, %171 : vector<2x8xf32>
    %173 = math.log %156 : vector<2x8xf32>
    %174 = arith.mulf %172, %173 : vector<2x8xf32>
    %175 = arith.subf %174, %156 : vector<2x8xf32>
    %cst_69 = arith.constant 0.918938517 : f32
    %176 = vector.broadcast %cst_69 : f32 to vector<2x8xf32>
    %177 = arith.addf %175, %176 : vector<2x8xf32>
    %178 = arith.addf %177, %170 : vector<2x8xf32>
    %179 = arith.subf %178, %154 : vector<2x8xf32>
    %180 = arith.subf %136, %179 : vector<2x8xf32>
    %cst_70 = arith.constant 1.000000e+00 : f32
    %181 = vector.broadcast %cst_70 : f32 to vector<2x8xf32>
    %182 = arith.subf %38, %181 : vector<2x8xf32>
    %183 = tpu.reciprocal %38 {approx = true} : vector<2x8xf32> -> vector<2x8xf32>
    %184 = arith.mulf %38, %183 : vector<2x8xf32>
    %cst_71 = arith.constant 2.000000e+00 : f32
    %185 = vector.broadcast %cst_71 : f32 to vector<2x8xf32>
    %186 = arith.subf %185, %184 : vector<2x8xf32>
    %187 = arith.mulf %183, %186 : vector<2x8xf32>
    %cst_72 = arith.constant 1.000000e+00 : f32
    %188 = vector.broadcast %cst_72 : f32 to vector<2x8xf32>
    %189 = arith.addf %38, %188 : vector<2x8xf32>
    %190 = tpu.reciprocal %189 {approx = true} : vector<2x8xf32> -> vector<2x8xf32>
    %191 = arith.mulf %189, %190 : vector<2x8xf32>
    %cst_73 = arith.constant 2.000000e+00 : f32
    %192 = vector.broadcast %cst_73 : f32 to vector<2x8xf32>
    %193 = arith.subf %192, %191 : vector<2x8xf32>
    %194 = arith.mulf %190, %193 : vector<2x8xf32>
    %195 = arith.addf %187, %194 : vector<2x8xf32>
    %cst_74 = arith.constant 2.000000e+00 : f32
    %196 = vector.broadcast %cst_74 : f32 to vector<2x8xf32>
    %197 = arith.addf %38, %196 : vector<2x8xf32>
    %198 = tpu.reciprocal %197 {approx = true} : vector<2x8xf32> -> vector<2x8xf32>
    %199 = arith.mulf %197, %198 : vector<2x8xf32>
    %cst_75 = arith.constant 2.000000e+00 : f32
    %200 = vector.broadcast %cst_75 : f32 to vector<2x8xf32>
    %201 = arith.subf %200, %199 : vector<2x8xf32>
    %202 = arith.mulf %198, %201 : vector<2x8xf32>
    %203 = arith.addf %195, %202 : vector<2x8xf32>
    %cst_76 = arith.constant 3.000000e+00 : f32
    %204 = vector.broadcast %cst_76 : f32 to vector<2x8xf32>
    %205 = arith.addf %38, %204 : vector<2x8xf32>
    %206 = tpu.reciprocal %205 {approx = true} : vector<2x8xf32> -> vector<2x8xf32>
    %207 = arith.mulf %205, %206 : vector<2x8xf32>
    %cst_77 = arith.constant 2.000000e+00 : f32
    %208 = vector.broadcast %cst_77 : f32 to vector<2x8xf32>
    %209 = arith.subf %208, %207 : vector<2x8xf32>
    %210 = arith.mulf %206, %209 : vector<2x8xf32>
    %211 = arith.addf %203, %210 : vector<2x8xf32>
    %cst_78 = arith.constant 4.000000e+00 : f32
    %212 = vector.broadcast %cst_78 : f32 to vector<2x8xf32>
    %213 = arith.addf %38, %212 : vector<2x8xf32>
    %214 = tpu.reciprocal %213 {approx = true} : vector<2x8xf32> -> vector<2x8xf32>
    %215 = arith.mulf %213, %214 : vector<2x8xf32>
    %cst_79 = arith.constant 2.000000e+00 : f32
    %216 = vector.broadcast %cst_79 : f32 to vector<2x8xf32>
    %217 = arith.subf %216, %215 : vector<2x8xf32>
    %218 = arith.mulf %214, %217 : vector<2x8xf32>
    %219 = arith.addf %211, %218 : vector<2x8xf32>
    %cst_80 = arith.constant 5.000000e+00 : f32
    %220 = vector.broadcast %cst_80 : f32 to vector<2x8xf32>
    %221 = arith.addf %38, %220 : vector<2x8xf32>
    %222 = tpu.reciprocal %221 {approx = true} : vector<2x8xf32> -> vector<2x8xf32>
    %223 = arith.mulf %221, %222 : vector<2x8xf32>
    %cst_81 = arith.constant 2.000000e+00 : f32
    %224 = vector.broadcast %cst_81 : f32 to vector<2x8xf32>
    %225 = arith.subf %224, %223 : vector<2x8xf32>
    %226 = arith.mulf %222, %225 : vector<2x8xf32>
    %227 = arith.addf %219, %226 : vector<2x8xf32>
    %cst_82 = arith.constant 6.000000e+00 : f32
    %228 = vector.broadcast %cst_82 : f32 to vector<2x8xf32>
    %229 = arith.addf %38, %228 : vector<2x8xf32>
    %230 = tpu.reciprocal %229 {approx = true} : vector<2x8xf32> -> vector<2x8xf32>
    %231 = arith.mulf %229, %230 : vector<2x8xf32>
    %cst_83 = arith.constant 2.000000e+00 : f32
    %232 = vector.broadcast %cst_83 : f32 to vector<2x8xf32>
    %233 = arith.subf %232, %231 : vector<2x8xf32>
    %234 = arith.mulf %230, %233 : vector<2x8xf32>
    %235 = arith.mulf %234, %234 : vector<2x8xf32>
    %cst_84 = arith.constant 0.0039682542 : f32
    %236 = vector.broadcast %cst_84 : f32 to vector<2x8xf32>
    %237 = arith.mulf %235, %236 : vector<2x8xf32>
    %cst_85 = arith.constant 0.00833333377 : f32
    %238 = vector.broadcast %cst_85 : f32 to vector<2x8xf32>
    %239 = arith.subf %238, %237 : vector<2x8xf32>
    %240 = arith.mulf %235, %239 : vector<2x8xf32>
    %cst_86 = arith.constant 0.0833333358 : f32
    %241 = vector.broadcast %cst_86 : f32 to vector<2x8xf32>
    %242 = arith.subf %241, %240 : vector<2x8xf32>
    %243 = arith.mulf %235, %242 : vector<2x8xf32>
    %244 = math.log %229 : vector<2x8xf32>
    %cst_87 = arith.constant 5.000000e-01 : f32
    %245 = vector.broadcast %cst_87 : f32 to vector<2x8xf32>
    %246 = arith.mulf %245, %234 : vector<2x8xf32>
    %247 = arith.subf %244, %246 : vector<2x8xf32>
    %248 = arith.subf %247, %243 : vector<2x8xf32>
    %249 = arith.subf %248, %227 : vector<2x8xf32>
    %250 = arith.mulf %182, %249 : vector<2x8xf32>
    %251 = arith.subf %180, %250 : vector<2x8xf32>
    %cst_88 = arith.constant 1.000000e+00 : f32
    %252 = vector.broadcast %cst_88 : f32 to vector<2x8xf32>
    %253 = arith.subf %51, %252 : vector<2x8xf32>
    %254 = tpu.reciprocal %51 {approx = true} : vector<2x8xf32> -> vector<2x8xf32>
    %255 = arith.mulf %51, %254 : vector<2x8xf32>
    %cst_89 = arith.constant 2.000000e+00 : f32
    %256 = vector.broadcast %cst_89 : f32 to vector<2x8xf32>
    %257 = arith.subf %256, %255 : vector<2x8xf32>
    %258 = arith.mulf %254, %257 : vector<2x8xf32>
    %cst_90 = arith.constant 1.000000e+00 : f32
    %259 = vector.broadcast %cst_90 : f32 to vector<2x8xf32>
    %260 = arith.addf %51, %259 : vector<2x8xf32>
    %261 = tpu.reciprocal %260 {approx = true} : vector<2x8xf32> -> vector<2x8xf32>
    %262 = arith.mulf %260, %261 : vector<2x8xf32>
    %cst_91 = arith.constant 2.000000e+00 : f32
    %263 = vector.broadcast %cst_91 : f32 to vector<2x8xf32>
    %264 = arith.subf %263, %262 : vector<2x8xf32>
    %265 = arith.mulf %261, %264 : vector<2x8xf32>
    %266 = arith.addf %258, %265 : vector<2x8xf32>
    %cst_92 = arith.constant 2.000000e+00 : f32
    %267 = vector.broadcast %cst_92 : f32 to vector<2x8xf32>
    %268 = arith.addf %51, %267 : vector<2x8xf32>
    %269 = tpu.reciprocal %268 {approx = true} : vector<2x8xf32> -> vector<2x8xf32>
    %270 = arith.mulf %268, %269 : vector<2x8xf32>
    %cst_93 = arith.constant 2.000000e+00 : f32
    %271 = vector.broadcast %cst_93 : f32 to vector<2x8xf32>
    %272 = arith.subf %271, %270 : vector<2x8xf32>
    %273 = arith.mulf %269, %272 : vector<2x8xf32>
    %274 = arith.addf %266, %273 : vector<2x8xf32>
    %cst_94 = arith.constant 3.000000e+00 : f32
    %275 = vector.broadcast %cst_94 : f32 to vector<2x8xf32>
    %276 = arith.addf %51, %275 : vector<2x8xf32>
    %277 = tpu.reciprocal %276 {approx = true} : vector<2x8xf32> -> vector<2x8xf32>
    %278 = arith.mulf %276, %277 : vector<2x8xf32>
    %cst_95 = arith.constant 2.000000e+00 : f32
    %279 = vector.broadcast %cst_95 : f32 to vector<2x8xf32>
    %280 = arith.subf %279, %278 : vector<2x8xf32>
    %281 = arith.mulf %277, %280 : vector<2x8xf32>
    %282 = arith.addf %274, %281 : vector<2x8xf32>
    %cst_96 = arith.constant 4.000000e+00 : f32
    %283 = vector.broadcast %cst_96 : f32 to vector<2x8xf32>
    %284 = arith.addf %51, %283 : vector<2x8xf32>
    %285 = tpu.reciprocal %284 {approx = true} : vector<2x8xf32> -> vector<2x8xf32>
    %286 = arith.mulf %284, %285 : vector<2x8xf32>
    %cst_97 = arith.constant 2.000000e+00 : f32
    %287 = vector.broadcast %cst_97 : f32 to vector<2x8xf32>
    %288 = arith.subf %287, %286 : vector<2x8xf32>
    %289 = arith.mulf %285, %288 : vector<2x8xf32>
    %290 = arith.addf %282, %289 : vector<2x8xf32>
    %cst_98 = arith.constant 5.000000e+00 : f32
    %291 = vector.broadcast %cst_98 : f32 to vector<2x8xf32>
    %292 = arith.addf %51, %291 : vector<2x8xf32>
    %293 = tpu.reciprocal %292 {approx = true} : vector<2x8xf32> -> vector<2x8xf32>
    %294 = arith.mulf %292, %293 : vector<2x8xf32>
    %cst_99 = arith.constant 2.000000e+00 : f32
    %295 = vector.broadcast %cst_99 : f32 to vector<2x8xf32>
    %296 = arith.subf %295, %294 : vector<2x8xf32>
    %297 = arith.mulf %293, %296 : vector<2x8xf32>
    %298 = arith.addf %290, %297 : vector<2x8xf32>
    %cst_100 = arith.constant 6.000000e+00 : f32
    %299 = vector.broadcast %cst_100 : f32 to vector<2x8xf32>
    %300 = arith.addf %51, %299 : vector<2x8xf32>
    %301 = tpu.reciprocal %300 {approx = true} : vector<2x8xf32> -> vector<2x8xf32>
    %302 = arith.mulf %300, %301 : vector<2x8xf32>
    %cst_101 = arith.constant 2.000000e+00 : f32
    %303 = vector.broadcast %cst_101 : f32 to vector<2x8xf32>
    %304 = arith.subf %303, %302 : vector<2x8xf32>
    %305 = arith.mulf %301, %304 : vector<2x8xf32>
    %306 = arith.mulf %305, %305 : vector<2x8xf32>
    %cst_102 = arith.constant 0.0039682542 : f32
    %307 = vector.broadcast %cst_102 : f32 to vector<2x8xf32>
    %308 = arith.mulf %306, %307 : vector<2x8xf32>
    %cst_103 = arith.constant 0.00833333377 : f32
    %309 = vector.broadcast %cst_103 : f32 to vector<2x8xf32>
    %310 = arith.subf %309, %308 : vector<2x8xf32>
    %311 = arith.mulf %306, %310 : vector<2x8xf32>
    %cst_104 = arith.constant 0.0833333358 : f32
    %312 = vector.broadcast %cst_104 : f32 to vector<2x8xf32>
    %313 = arith.subf %312, %311 : vector<2x8xf32>
    %314 = arith.mulf %306, %313 : vector<2x8xf32>
    %315 = math.log %300 : vector<2x8xf32>
    %cst_105 = arith.constant 5.000000e-01 : f32
    %316 = vector.broadcast %cst_105 : f32 to vector<2x8xf32>
    %317 = arith.mulf %316, %305 : vector<2x8xf32>
    %318 = arith.subf %315, %317 : vector<2x8xf32>
    %319 = arith.subf %318, %314 : vector<2x8xf32>
    %320 = arith.subf %319, %298 : vector<2x8xf32>
    %321 = arith.mulf %253, %320 : vector<2x8xf32>
    %322 = arith.subf %251, %321 : vector<2x8xf32>
    %323 = arith.addf %38, %51 : vector<2x8xf32>
    %cst_106 = arith.constant 2.000000e+00 : f32
    %324 = vector.broadcast %cst_106 : f32 to vector<2x8xf32>
    %325 = arith.subf %323, %324 : vector<2x8xf32>
    %326 = arith.addf %38, %51 : vector<2x8xf32>
    %327 = tpu.reciprocal %326 {approx = true} : vector<2x8xf32> -> vector<2x8xf32>
    %328 = arith.mulf %326, %327 : vector<2x8xf32>
    %cst_107 = arith.constant 2.000000e+00 : f32
    %329 = vector.broadcast %cst_107 : f32 to vector<2x8xf32>
    %330 = arith.subf %329, %328 : vector<2x8xf32>
    %331 = arith.mulf %327, %330 : vector<2x8xf32>
    %cst_108 = arith.constant 1.000000e+00 : f32
    %332 = vector.broadcast %cst_108 : f32 to vector<2x8xf32>
    %333 = arith.addf %326, %332 : vector<2x8xf32>
    %334 = tpu.reciprocal %333 {approx = true} : vector<2x8xf32> -> vector<2x8xf32>
    %335 = arith.mulf %333, %334 : vector<2x8xf32>
    %cst_109 = arith.constant 2.000000e+00 : f32
    %336 = vector.broadcast %cst_109 : f32 to vector<2x8xf32>
    %337 = arith.subf %336, %335 : vector<2x8xf32>
    %338 = arith.mulf %334, %337 : vector<2x8xf32>
    %339 = arith.addf %331, %338 : vector<2x8xf32>
    %cst_110 = arith.constant 2.000000e+00 : f32
    %340 = vector.broadcast %cst_110 : f32 to vector<2x8xf32>
    %341 = arith.addf %326, %340 : vector<2x8xf32>
    %342 = tpu.reciprocal %341 {approx = true} : vector<2x8xf32> -> vector<2x8xf32>
    %343 = arith.mulf %341, %342 : vector<2x8xf32>
    %cst_111 = arith.constant 2.000000e+00 : f32
    %344 = vector.broadcast %cst_111 : f32 to vector<2x8xf32>
    %345 = arith.subf %344, %343 : vector<2x8xf32>
    %346 = arith.mulf %342, %345 : vector<2x8xf32>
    %347 = arith.addf %339, %346 : vector<2x8xf32>
    %cst_112 = arith.constant 3.000000e+00 : f32
    %348 = vector.broadcast %cst_112 : f32 to vector<2x8xf32>
    %349 = arith.addf %326, %348 : vector<2x8xf32>
    %350 = tpu.reciprocal %349 {approx = true} : vector<2x8xf32> -> vector<2x8xf32>
    %351 = arith.mulf %349, %350 : vector<2x8xf32>
    %cst_113 = arith.constant 2.000000e+00 : f32
    %352 = vector.broadcast %cst_113 : f32 to vector<2x8xf32>
    %353 = arith.subf %352, %351 : vector<2x8xf32>
    %354 = arith.mulf %350, %353 : vector<2x8xf32>
    %355 = arith.addf %347, %354 : vector<2x8xf32>
    %cst_114 = arith.constant 4.000000e+00 : f32
    %356 = vector.broadcast %cst_114 : f32 to vector<2x8xf32>
    %357 = arith.addf %326, %356 : vector<2x8xf32>
    %358 = tpu.reciprocal %357 {approx = true} : vector<2x8xf32> -> vector<2x8xf32>
    %359 = arith.mulf %357, %358 : vector<2x8xf32>
    %cst_115 = arith.constant 2.000000e+00 : f32
    %360 = vector.broadcast %cst_115 : f32 to vector<2x8xf32>
    %361 = arith.subf %360, %359 : vector<2x8xf32>
    %362 = arith.mulf %358, %361 : vector<2x8xf32>
    %363 = arith.addf %355, %362 : vector<2x8xf32>
    %cst_116 = arith.constant 5.000000e+00 : f32
    %364 = vector.broadcast %cst_116 : f32 to vector<2x8xf32>
    %365 = arith.addf %326, %364 : vector<2x8xf32>
    %366 = tpu.reciprocal %365 {approx = true} : vector<2x8xf32> -> vector<2x8xf32>
    %367 = arith.mulf %365, %366 : vector<2x8xf32>
    %cst_117 = arith.constant 2.000000e+00 : f32
    %368 = vector.broadcast %cst_117 : f32 to vector<2x8xf32>
    %369 = arith.subf %368, %367 : vector<2x8xf32>
    %370 = arith.mulf %366, %369 : vector<2x8xf32>
    %371 = arith.addf %363, %370 : vector<2x8xf32>
    %cst_118 = arith.constant 6.000000e+00 : f32
    %372 = vector.broadcast %cst_118 : f32 to vector<2x8xf32>
    %373 = arith.addf %326, %372 : vector<2x8xf32>
    %374 = tpu.reciprocal %373 {approx = true} : vector<2x8xf32> -> vector<2x8xf32>
    %375 = arith.mulf %373, %374 : vector<2x8xf32>
    %cst_119 = arith.constant 2.000000e+00 : f32
    %376 = vector.broadcast %cst_119 : f32 to vector<2x8xf32>
    %377 = arith.subf %376, %375 : vector<2x8xf32>
    %378 = arith.mulf %374, %377 : vector<2x8xf32>
    %379 = arith.mulf %378, %378 : vector<2x8xf32>
    %cst_120 = arith.constant 0.0039682542 : f32
    %380 = vector.broadcast %cst_120 : f32 to vector<2x8xf32>
    %381 = arith.mulf %379, %380 : vector<2x8xf32>
    %cst_121 = arith.constant 0.00833333377 : f32
    %382 = vector.broadcast %cst_121 : f32 to vector<2x8xf32>
    %383 = arith.subf %382, %381 : vector<2x8xf32>
    %384 = arith.mulf %379, %383 : vector<2x8xf32>
    %cst_122 = arith.constant 0.0833333358 : f32
    %385 = vector.broadcast %cst_122 : f32 to vector<2x8xf32>
    %386 = arith.subf %385, %384 : vector<2x8xf32>
    %387 = arith.mulf %379, %386 : vector<2x8xf32>
    %388 = math.log %373 : vector<2x8xf32>
    %cst_123 = arith.constant 5.000000e-01 : f32
    %389 = vector.broadcast %cst_123 : f32 to vector<2x8xf32>
    %390 = arith.mulf %389, %378 : vector<2x8xf32>
    %391 = arith.subf %388, %390 : vector<2x8xf32>
    %392 = arith.subf %391, %387 : vector<2x8xf32>
    %393 = arith.subf %392, %371 : vector<2x8xf32>
    %394 = arith.mulf %325, %393 : vector<2x8xf32>
    %395 = arith.addf %322, %394 : vector<2x8xf32>
    %cst_124 = arith.constant 1.000000e+00 : f32
    %396 = vector.broadcast %cst_124 : f32 to vector<2x8xf32>
    %397 = arith.subf %38, %396 : vector<2x8xf32>
    %398 = arith.addf %38, %51 : vector<2x8xf32>
    %cst_125 = arith.constant 2.000000e+00 : f32
    %399 = vector.broadcast %cst_125 : f32 to vector<2x8xf32>
    %400 = arith.subf %398, %399 : vector<2x8xf32>
    %401 = tpu.reciprocal %400 {approx = true} : vector<2x8xf32> -> vector<2x8xf32>
    %402 = arith.mulf %400, %401 : vector<2x8xf32>
    %cst_126 = arith.constant 2.000000e+00 : f32
    %403 = vector.broadcast %cst_126 : f32 to vector<2x8xf32>
    %404 = arith.subf %403, %402 : vector<2x8xf32>
    %405 = arith.mulf %401, %404 : vector<2x8xf32>
    %406 = arith.mulf %397, %405 : vector<2x8xf32>
    %cst_127 = arith.constant 5.000000e-01 : f32
    %407 = vector.broadcast %cst_127 : f32 to vector<2x8xf32>
    %408 = arith.subf %406, %407 : vector<2x8xf32>
    %cst_128 = arith.constant 2.000000e+00 : f32
    %409 = vector.broadcast %cst_128 : f32 to vector<2x8xf32>
    %410 = arith.mulf %409, %408 : vector<2x8xf32>
    %cst_129 = arith.constant 1.000000e+00 : f32
    %411 = vector.broadcast %cst_129 : f32 to vector<2x8xf32>
    %412 = arith.mulf %410, %411 : vector<2x8xf32>
    %c0_130 = arith.constant 0 : index
    %c0_131 = arith.constant 0 : index
    %413 = vector.load %arg12[%c0_130, %c0_131] : memref<7x8xf32, #tpu.memory_space<vmem>>, vector<2x8xf32>
    tpu.vector_store %arg12[%c0_130, %c0_131], %412 {strides = array<i32>} : memref<7x8xf32, #tpu.memory_space<vmem>>, vector<2x8xf32>,
    %c2 = arith.constant 2 : index
    %c0_132 = arith.constant 0 : index
    %414 = vector.load %arg12[%c2, %c0_132] : memref<7x8xf32, #tpu.memory_space<vmem>>, vector<2x8xf32>
    tpu.vector_store %arg12[%c2, %c0_132], %406 {strides = array<i32>} : memref<7x8xf32, #tpu.memory_space<vmem>>, vector<2x8xf32>,
    %cst_133 = arith.constant 9.99999997E-7 : f32
    %cst_134 = arith.constant 0.999998986 : f32
    %415 = vector.broadcast %cst_133 : f32 to vector<2x8xf32>
    %416 = arith.maximumf %415, %406 : vector<2x8xf32>
    %417 = vector.broadcast %cst_134 : f32 to vector<2x8xf32>
    %418 = arith.minimumf %417, %416 : vector<2x8xf32>
    %cst_135 = arith.constant 1.000000e+00 : f32
    %419 = vector.broadcast %cst_135 : f32 to vector<2x8xf32>
    %420 = arith.subf %38, %419 : vector<2x8xf32>
    %421 = math.log %418 : vector<2x8xf32>
    %422 = arith.mulf %420, %421 : vector<2x8xf32>
    %cst_136 = arith.constant 1.000000e+00 : f32
    %423 = vector.broadcast %cst_136 : f32 to vector<2x8xf32>
    %424 = arith.subf %51, %423 : vector<2x8xf32>
    %cst_137 = arith.constant 0.000000e+00 : f32
    %425 = vector.broadcast %cst_137 : f32 to vector<2x8xf32>
    %426 = arith.subf %425, %418 : vector<2x8xf32>
    %427 = math.log1p %426 : vector<2x8xf32>
    %428 = arith.mulf %424, %427 : vector<2x8xf32>
    %429 = arith.addf %422, %428 : vector<2x8xf32>
    %430 = arith.subf %429, %180 : vector<2x8xf32>
    %c4 = arith.constant 4 : index
    %c0_138 = arith.constant 0 : index
    %431 = vector.load %arg12[%c4, %c0_138] : memref<7x8xf32, #tpu.memory_space<vmem>>, vector<2x8xf32>
    tpu.vector_store %arg12[%c4, %c0_138], %430 {strides = array<i32>} : memref<7x8xf32, #tpu.memory_space<vmem>>, vector<2x8xf32>,
    %cst_139 = arith.constant dense<0.000000e+00> : vector<8xf32>
    %432 = vector.multi_reduction <add>, %395, %cst_139 [0] : vector<2x8xf32> to vector<8xf32>
    %433 = vector.shape_cast %432 : vector<8xf32> to vector<1x8xf32>
    %cst_140 = arith.constant 2.000000e+00 : f32
    %434 = vector.broadcast %cst_140 : f32 to vector<1x8xf32>
    %435 = arith.divf %433, %434 : vector<1x8xf32>
    %cst_141 = arith.constant 0.000000e+00 : f32
    %436 = vector.broadcast %cst_141 : f32 to vector<1x8xf32>
    %437 = arith.subf %436, %435 : vector<1x8xf32>
    %c6 = arith.constant 6 : index
    %c0_142 = arith.constant 0 : index
    %438 = vector.load %arg12[%c6, %c0_142] : memref<7x8xf32, #tpu.memory_space<vmem>>, vector<1x8xf32>
    tpu.vector_store %arg12[%c6, %c0_142], %437 {strides = array<i32>} : memref<7x8xf32, #tpu.memory_space<vmem>>, vector<1x8xf32>,
    return
  }
  func.func @transform_0(%arg0: i32) -> (i32, i32) {
    %c0_i32 = arith.constant 0 : i32
    %c0_i32_0 = arith.constant 0 : i32
    return %c0_i32, %arg0 : i32, i32
  }
  func.func @transform_1(%arg0: i32) -> (i32, i32) {
    %c0_i32 = arith.constant 0 : i32
    %c0_i32_0 = arith.constant 0 : i32
    %c0_i32_1 = arith.constant 0 : i32
    return %c0_i32, %c0_i32_0 : i32, i32
  }
  func.func @transform_2(%arg0: i32) -> (i32, i32) {
    %c0_i32 = arith.constant 0 : i32
    %c0_i32_0 = arith.constant 0 : i32
    %c0_i32_1 = arith.constant 0 : i32
    return %c0_i32, %c0_i32_0 : i32, i32
  }
  func.func @transform_3(%arg0: i32) -> (i32, i32) {
    %c0_i32 = arith.constant 0 : i32
    %c0_i32_0 = arith.constant 0 : i32
    %c0_i32_1 = arith.constant 0 : i32
    return %c0_i32, %c0_i32_0 : i32, i32
  }
  func.func @transform_4(%arg0: i32) -> (i32, i32) {
    %c0_i32 = arith.constant 0 : i32
    %c0_i32_0 = arith.constant 0 : i32
    %c0_i32_1 = arith.constant 0 : i32
    return %c0_i32, %c0_i32_0 : i32, i32
  }
  func.func @transform_5(%arg0: i32) -> (i32, i32) {
    %c0_i32 = arith.constant 0 : i32
    %c0_i32_0 = arith.constant 0 : i32
    %c0_i32_1 = arith.constant 0 : i32
    return %c0_i32, %c0_i32_0 : i32, i32
  }
  func.func @transform_6(%arg0: i32) -> (i32, i32) {
    %c0_i32 = arith.constant 0 : i32
    %c0_i32_0 = arith.constant 0 : i32
    %c0_i32_1 = arith.constant 0 : i32
    return %c0_i32, %c0_i32_0 : i32, i32
  }
  func.func @transform_7(%arg0: i32) -> (i32, i32) {
    %c0_i32 = arith.constant 0 : i32
    %c0_i32_0 = arith.constant 0 : i32
    %c0_i32_1 = arith.constant 0 : i32
    return %c0_i32, %c0_i32_0 : i32, i32
  }
  func.func @transform_8(%arg0: i32) -> (i32, i32) {
    %c0_i32 = arith.constant 0 : i32
    %c0_i32_0 = arith.constant 0 : i32
    %c0_i32_1 = arith.constant 0 : i32
    return %c0_i32, %c0_i32_0 : i32, i32
  }
  func.func @transform_9(%arg0: i32) -> (i32, i32) {
    %c0_i32 = arith.constant 0 : i32
    %c0_i32_0 = arith.constant 0 : i32
    %c0_i32_1 = arith.constant 0 : i32
    return %c0_i32, %c0_i32_0 : i32, i32
  }
  func.func @transform_10(%arg0: i32) -> (i32, i32) {
    %c0_i32 = arith.constant 0 : i32
    %c0_i32_0 = arith.constant 0 : i32
    %c0_i32_1 = arith.constant 0 : i32
    return %c0_i32, %c0_i32_0 : i32, i32
  }
  func.func @transform_11(%arg0: i32) -> (i32, i32) {
    %c0_i32 = arith.constant 0 : i32
    %c0_i32_0 = arith.constant 0 : i32
    return %c0_i32, %arg0 : i32, i32
  }
}

</mosaic_0001>

<llo_original>
// kernel: _lambda_.1
$region0: #{_lambda_.1}
  #allocation0 [shape = 'u32[]', space=smem, size = 0x4, offset = 0x4, fixed_abs, tag = 'smem constant byte address 0x4 - core index']
  #allocation1 [shape = 'u32[144,128]{1,0:T(1,128)}', space=vmem, size = 0x12000, scoped, tag = 'internal scratch']
  %s0 = inlined_call_operand.vmem [shape: f32[8,8], index: 0, kind: input, shape index: {}]
  %s1 = inlined_call_operand.vmem [shape: f32[32,8], index: 1, kind: input, shape index: {}]
  %s2 = inlined_call_operand.vmem [shape: f32[32,1], index: 2, kind: input, shape index: {}]
  %s3 = inlined_call_operand.vmem [shape: f32[32,32], index: 3, kind: input, shape index: {}]
  %s4 = inlined_call_operand.vmem [shape: f32[32,1], index: 4, kind: input, shape index: {}]
  %s5 = inlined_call_operand.vmem [shape: f32[32,32], index: 5, kind: input, shape index: {}]
  %s6 = inlined_call_operand.vmem [shape: f32[32,1], index: 6, kind: input, shape index: {}]
  %s7 = inlined_call_operand.vmem [shape: f32[2,32], index: 7, kind: input, shape index: {}]
  %s8 = inlined_call_operand.vmem [shape: f32[2,1], index: 8, kind: input, shape index: {}]
  %s9 = inlined_call_operand.vmem [shape: f32[2,32], index: 9, kind: input, shape index: {}]
  %s10 = inlined_call_operand.vmem [shape: f32[2,1], index: 10, kind: input, shape index: {}]
  %s11 = inlined_call_operand.vmem [shape: f32[7,8], index: 11, kind: output, shape index: {}]
  %s12 = sld [smem:[#allocation0]]
  $region54: #{_lambda_.1} parent=0
    _
  %s14 = ssub.s32 1, %s12
  %s15 = scalar_select 0, %s14, %s12
  // Predicated region
  $region2: #{_lambda_.1} parent=0 // pred_check
    _
  $region3: #{_lambda_.1} parent=0 // pred_check_branch
    %17 = sbr.rel (0) target = $region5
  $region4: #{_lambda_.1} parent=0 // pred_region
    _
  $region5: #{_lambda_.1} parent=0 // pred_fallthru
    _
  // Predicated region
  $region6: #{_lambda_.1} parent=0 // pred_check
    _
  $region7: #{_lambda_.1} parent=0 // pred_check_branch
    %19 = sbr.rel (0) target = $region9
  $region8: #{_lambda_.1} parent=0 // pred_region
    _
  $region9: #{_lambda_.1} parent=0 // pred_fallthru
    _
  // Predicated region
  $region10: #{_lambda_.1} parent=0 // pred_check
    _
  $region11: #{_lambda_.1} parent=0 // pred_check_branch
    %21 = sbr.rel (0) target = $region13
  $region12: #{_lambda_.1} parent=0 // pred_region
    _
  $region13: #{_lambda_.1} parent=0 // pred_fallthru
    _
  // Predicated region
  $region14: #{_lambda_.1} parent=0 // pred_check
    _
  $region15: #{_lambda_.1} parent=0 // pred_check_branch
    %23 = sbr.rel (0) target = $region17
  $region16: #{_lambda_.1} parent=0 // pred_region
    _
  $region17: #{_lambda_.1} parent=0 // pred_fallthru
    _
  // Predicated region
  $region18: #{_lambda_.1} parent=0 // pred_check
    _
  $region19: #{_lambda_.1} parent=0 // pred_check_branch
    %25 = sbr.rel (0) target = $region21
  $region20: #{_lambda_.1} parent=0 // pred_region
    _
  $region21: #{_lambda_.1} parent=0 // pred_fallthru
    _
  // Predicated region
  $region22: #{_lambda_.1} parent=0 // pred_check
    _
  $region23: #{_lambda_.1} parent=0 // pred_check_branch
    %27 = sbr.rel (0) target = $region25
  $region24: #{_lambda_.1} parent=0 // pred_region
    _
  $region25: #{_lambda_.1} parent=0 // pred_fallthru
    _
  // Predicated region
  $region26: #{_lambda_.1} parent=0 // pred_check
    _
  $region27: #{_lambda_.1} parent=0 // pred_check_branch
    %29 = sbr.rel (0) target = $region29
  $region28: #{_lambda_.1} parent=0 // pred_region
    _
  $region29: #{_lambda_.1} parent=0 // pred_fallthru
    _
  // Predicated region
  $region30: #{_lambda_.1} parent=0 // pred_check
    _
  $region31: #{_lambda_.1} parent=0 // pred_check_branch
    %31 = sbr.rel (0) target = $region33
  $region32: #{_lambda_.1} parent=0 // pred_region
    _
  $region33: #{_lambda_.1} parent=0 // pred_fallthru
    _
  // Predicated region
  $region34: #{_lambda_.1} parent=0 // pred_check
    _
  $region35: #{_lambda_.1} parent=0 // pred_check_branch
    %33 = sbr.rel (0) target = $region37
  $region36: #{_lambda_.1} parent=0 // pred_region
    _
  $region37: #{_lambda_.1} parent=0 // pred_fallthru
    _
  // Predicated region
  $region38: #{_lambda_.1} parent=0 // pred_check
    _
  $region39: #{_lambda_.1} parent=0 // pred_check_branch
    %35 = sbr.rel (0) target = $region41
  $region40: #{_lambda_.1} parent=0 // pred_region
    _
  $region41: #{_lambda_.1} parent=0 // pred_fallthru
    _
  // Predicated region
  $region42: #{_lambda_.1} parent=0 // pred_check
    _
  $region43: #{_lambda_.1} parent=0 // pred_check_branch
    %37 = sbr.rel (0) target = $region45
  $region44: #{_lambda_.1} parent=0 // pred_region
    _
  $region45: #{_lambda_.1} parent=0 // pred_fallthru
    _
  %v38 = vld [vmem:[%s0] sm:$0xff]
  %v39 = vld [vmem:[%s1] sm:$0xff]
  %v40 = vld [vmem:[%s1 + $0x8] sm:$0xff]
  %v41 = vld [vmem:[%s1 + $0x10] sm:$0xff]
  %v42 = vld [vmem:[%s1 + $0x18] sm:$0xff]
  %v43 = vld [vmem:[%s2] sm:$0xff]
  %v44 = vld [vmem:[%s2 + $0x8] sm:$0xff]
  %v45 = vld [vmem:[%s2 + $0x10] sm:$0xff]
  %v46 = vld [vmem:[%s2 + $0x18] sm:$0xff]
  %v47 = vld [vmem:[%s3] sm:$0xff]
  %v48 = vld [vmem:[%s3 + $0x8] sm:$0xff]
  %v49 = vld [vmem:[%s3 + $0x10] sm:$0xff]
  %v50 = vld [vmem:[%s3 + $0x18] sm:$0xff]
  %v51 = vld [vmem:[%s4] sm:$0xff]
  %v52 = vld [vmem:[%s4 + $0x8] sm:$0xff]
  %v53 = vld [vmem:[%s4 + $0x10] sm:$0xff]
  %v54 = vld [vmem:[%s4 + $0x18] sm:$0xff]
  %v55 = vld [vmem:[%s5] sm:$0xff]
  %v56 = vld [vmem:[%s5 + $0x8] sm:$0xff]
  %v57 = vld [vmem:[%s5 + $0x10] sm:$0xff]
  %v58 = vld [vmem:[%s5 + $0x18] sm:$0xff]
  %v59 = vld [vmem:[%s6] sm:$0xff]
  %v60 = vld [vmem:[%s6 + $0x8] sm:$0xff]
  %v61 = vld [vmem:[%s6 + $0x10] sm:$0xff]
  %v62 = vld [vmem:[%s6 + $0x18] sm:$0xff]
  %v63 = vld [vmem:[%s7] sm:$0x3]
  %v64 = vld [vmem:[%s8] sm:$0x3]
  %v65 = vld [vmem:[%s9] sm:$0x3]
  %v66 = vld [vmem:[%s10] sm:$0x3]
  %68 = vset.pattern.permute.xlu0 0
  %69 = vperm.xlu0 %68, %v43
  %v70 = vpop.permute.xlu0 %69
  %73 = vset.pattern.permute.xlu0 0
  %74 = vperm.xlu0 %73, %v44
  %v75 = vpop.permute.xlu0 %74
  %78 = vset.pattern.permute.xlu0 0
  %79 = vperm.xlu0 %78, %v45
  %v80 = vpop.permute.xlu0 %79
  %83 = vset.pattern.permute.xlu0 0
  %84 = vperm.xlu0 %83, %v46
  %v85 = vpop.permute.xlu0 %84
  %vm87 = vcmask 64512
  %v89 = vsel %vm87, %v39, 0
  %v92 = vsel %vm87, %v40, 0
  %v95 = vsel %vm87, %v41, 0
  %v98 = vsel %vm87, %v42, 0
  %100 = vmatprep.subr.mxu0 0.0
  %101 = vmatpush1.msra.mxu0 0.0
  %102 = vmatprep.subr.mxu0 0.0
  %103 = vmatpush1.msra.mxu0 0.0
  %104 = vmatprep.subr.mxu0 0.0
  %105 = vmatpush1.msra.mxu0 0.0
  %106 = vmatprep.subr.mxu0 0.0
  %107 = vmatpush1.msra.mxu0 0.0
  %108 = vmatprep.subr.mxu0 0.0
  %109 = vmatpush1.msra.mxu0 0.0
  %110 = vmatprep.subr.mxu0 0.0
  %111 = vmatpush1.msra.mxu0 0.0
  %112 = vmatprep.subr.mxu0 0.0
  %113 = vmatpush1.msra.mxu0 0.0
  %114 = vmatprep.subr.mxu0 0.0
  %115 = vmatpush1.msra.mxu0 0.0
  %116 = vmatprep.subr.mxu0 0.0
  %117 = vmatpush1.msra.mxu0 0.0
  %118 = vmatprep.subr.mxu0 0.0
  %119 = vmatpush1.msra.mxu0 0.0
  %120 = vmatprep.subr.mxu0 0.0
  %121 = vmatpush1.msra.mxu0 0.0
  %122 = vmatprep.subr.mxu0 0.0
  %123 = vmatpush1.msra.mxu0 0.0
  %124 = vmatprep.subr.mxu0 0.0
  %125 = vmatpush1.msra.mxu0 0.0
  %126 = vmatprep.subr.mxu0 0.0
  %127 = vmatpush1.msra.mxu0 0.0
  %128 = vmatprep.subr.mxu0 0.0
  %129 = vmatpush1.msra.mxu0 0.0
  %130 = vmatprep.subr.mxu0 0.0
  %131 = vmatpush1.msra.mxu0 %v38
  %132 = vmatprep.subr.mxu0 0.0
  %133 = vmatpush2.msra.mxu0 0.0
  %134 = vmatprep.subr.mxu0 0.0
  %135 = vmatpush2.msra.mxu0 0.0
  %136 = vmatprep.subr.mxu0 0.0
  %137 = vmatpush2.msra.mxu0 0.0
  %138 = vmatprep.subr.mxu0 0.0
  %139 = vmatpush2.msra.mxu0 0.0
  %140 = vmatprep.subr.mxu0 0.0
  %141 = vmatpush2.msra.mxu0 0.0
  %142 = vmatprep.subr.mxu0 0.0
  %143 = vmatpush2.msra.mxu0 0.0
  %144 = vmatprep.subr.mxu0 0.0
  %145 = vmatpush2.msra.mxu0 0.0
  %146 = vmatprep.subr.mxu0 0.0
  %147 = vmatpush2.msra.mxu0 0.0
  %148 = vmatprep.subr.mxu0 0.0
  %149 = vmatpush2.msra.mxu0 0.0
  %150 = vmatprep.subr.mxu0 0.0
  %151 = vmatpush2.msra.mxu0 0.0
  %152 = vmatprep.subr.mxu0 0.0
  %153 = vmatpush2.msra.mxu0 0.0
  %154 = vmatprep.subr.mxu0 0.0
  %155 = vmatpush2.msra.mxu0 0.0
  %156 = vmatprep.subr.mxu0 0.0
  %157 = vmatpush2.msra.mxu0 0.0
  %158 = vmatprep.subr.mxu0 0.0
  %159 = vmatpush2.msra.mxu0 0.0
  %160 = vmatprep.subr.mxu0 0.0
  %161 = vmatpush2.msra.mxu0 0.0
  %162 = vmatprep.subr.mxu0 0.0
  %163 = vmatpush2.msra.mxu0 0.0
  %164 = vmatprep.mubr.f32.mxu0 0.0
  %165 = vmatmul.mubr.f32.gmra.mxu0 %v89
  %v166 = vpop.f32.mrf.mxu0
  %v167 = vadd.f32 %v70, %v166
  %v168 = vpop.f32.mrf.mxu0
  %169 = vmatprep.mubr.f32.mxu0 0.0
  %170 = vmatmul.mubr.f32.gmra.mxu0 %v92
  %v171 = vpop.f32.mrf.mxu0
  %v172 = vadd.f32 %v75, %v171
  %v173 = vpop.f32.mrf.mxu0
  %174 = vmatprep.mubr.f32.mxu0 0.0
  %175 = vmatmul.mubr.f32.gmra.mxu0 %v95
  %v176 = vpop.f32.mrf.mxu0
  %v177 = vadd.f32 %v80, %v176
  %v178 = vpop.f32.mrf.mxu0
  %179 = vmatprep.mubr.f32.mxu0 0.0
  %180 = vmatmul.mubr.f32.gmra.mxu0 %v98
  %v181 = vpop.f32.mrf.mxu0
  %v182 = vadd.f32 %v85, %v181
  %v183 = vpop.f32.mrf.mxu0
  %184 = vdwg.mxu0
  %v185 = vmax.f32 %v167, 0.0
  %v186 = vmax.f32 %v172, 0.0
  %v187 = vmax.f32 %v177, 0.0
  %v188 = vmax.f32 %v182, 0.0
  %190 = vset.pattern.permute.xlu0 0
  %191 = vperm.xlu0 %190, %v51
  %v192 = vpop.permute.xlu0 %191
  %195 = vset.pattern.permute.xlu0 0
  %196 = vperm.xlu0 %195, %v52
  %v197 = vpop.permute.xlu0 %196
  %200 = vset.pattern.permute.xlu0 0
  %201 = vperm.xlu0 %200, %v53
  %v202 = vpop.permute.xlu0 %201
  %205 = vset.pattern.permute.xlu0 0
  %206 = vperm.xlu0 %205, %v54
  %v207 = vpop.permute.xlu0 %206
  %vm209 = vcmask 261120
  %v211 = vsel %vm209, %v47, 0
  %v214 = vsel %vm209, %v48, 0
  %v217 = vsel %vm209, %v49, 0
  %v220 = vsel %vm209, %v50, 0
  %222 = vmatprep.subr.mxu0 0.0
  %223 = vmatpush1.msra.mxu0 0.0
  %224 = vmatprep.subr.mxu0 0.0
  %225 = vmatpush1.msra.mxu0 0.0
  %226 = vmatprep.subr.mxu0 0.0
  %227 = vmatpush1.msra.mxu0 0.0
  %228 = vmatprep.subr.mxu0 0.0
  %229 = vmatpush1.msra.mxu0 0.0
  %230 = vmatprep.subr.mxu0 0.0
  %231 = vmatpush1.msra.mxu0 0.0
  %232 = vmatprep.subr.mxu0 0.0
  %233 = vmatpush1.msra.mxu0 0.0
  %234 = vmatprep.subr.mxu0 0.0
  %235 = vmatpush1.msra.mxu0 0.0
  %236 = vmatprep.subr.mxu0 0.0
  %237 = vmatpush1.msra.mxu0 0.0
  %238 = vmatprep.subr.mxu0 0.0
  %239 = vmatpush1.msra.mxu0 0.0
  %240 = vmatprep.subr.mxu0 0.0
  %241 = vmatpush1.msra.mxu0 0.0
  %242 = vmatprep.subr.mxu0 0.0
  %243 = vmatpush1.msra.mxu0 0.0
  %244 = vmatprep.subr.mxu0 0.0
  %245 = vmatpush1.msra.mxu0 0.0
  %246 = vmatprep.subr.mxu0 0.0
  %247 = vmatpush1.msra.mxu0 %v188
  %248 = vmatprep.subr.mxu0 0.0
  %249 = vmatpush1.msra.mxu0 %v187
  %250 = vmatprep.subr.mxu0 0.0
  %251 = vmatpush1.msra.mxu0 %v186
  %252 = vmatprep.subr.mxu0 0.0
  %253 = vmatpush1.msra.mxu0 %v185
  %254 = vmatprep.subr.mxu0 0.0
  %255 = vmatpush2.msra.mxu0 0.0
  %256 = vmatprep.subr.mxu0 0.0
  %257 = vmatpush2.msra.mxu0 0.0
  %258 = vmatprep.subr.mxu0 0.0
  %259 = vmatpush2.msra.mxu0 0.0
  %260 = vmatprep.subr.mxu0 0.0
  %261 = vmatpush2.msra.mxu0 0.0
  %262 = vmatprep.subr.mxu0 0.0
  %263 = vmatpush2.msra.mxu0 0.0
  %264 = vmatprep.subr.mxu0 0.0
  %265 = vmatpush2.msra.mxu0 0.0
  %266 = vmatprep.subr.mxu0 0.0
  %267 = vmatpush2.msra.mxu0 0.0
  %268 = vmatprep.subr.mxu0 0.0
  %269 = vmatpush2.msra.mxu0 0.0
  %270 = vmatprep.subr.mxu0 0.0
  %271 = vmatpush2.msra.mxu0 0.0
  %272 = vmatprep.subr.mxu0 0.0
  %273 = vmatpush2.msra.mxu0 0.0
  %274 = vmatprep.subr.mxu0 0.0
  %275 = vmatpush2.msra.mxu0 0.0
  %276 = vmatprep.subr.mxu0 0.0
  %277 = vmatpush2.msra.mxu0 0.0
  %278 = vmatprep.subr.mxu0 0.0
  %279 = vmatpush2.msra.mxu0 0.0
  %280 = vmatprep.subr.mxu0 0.0
  %281 = vmatpush2.msra.mxu0 0.0
  %282 = vmatprep.subr.mxu0 0.0
  %283 = vmatpush2.msra.mxu0 0.0
  %284 = vmatprep.subr.mxu0 0.0
  %285 = vmatpush2.msra.mxu0 0.0
  %286 = vmatprep.mubr.f32.mxu0 0.0
  %287 = vmatmul.mubr.f32.gmra.mxu0 %v211
  %v288 = vpop.f32.mrf.mxu0
  %v289 = vadd.f32 %v192, %v288
  %v290 = vpop.f32.mrf.mxu0
  %291 = vmatprep.mubr.f32.mxu0 0.0
  %292 = vmatmul.mubr.f32.gmra.mxu0 %v214
  %v293 = vpop.f32.mrf.mxu0
  %v294 = vadd.f32 %v197, %v293
  %v295 = vpop.f32.mrf.mxu0
  %296 = vmatprep.mubr.f32.mxu0 0.0
  %297 = vmatmul.mubr.f32.gmra.mxu0 %v217
  %v298 = vpop.f32.mrf.mxu0
  %v299 = vadd.f32 %v202, %v298
  %v300 = vpop.f32.mrf.mxu0
  %301 = vmatprep.mubr.f32.mxu0 0.0
  %302 = vmatmul.mubr.f32.gmra.mxu0 %v220
  %v303 = vpop.f32.mrf.mxu0
  %v304 = vadd.f32 %v207, %v303
  %v305 = vpop.f32.mrf.mxu0
  %306 = vdwg.mxu0
  %v307 = vmax.f32 %v289, 0.0
  %v308 = vmax.f32 %v294, 0.0
  %v309 = vmax.f32 %v299, 0.0
  %v310 = vmax.f32 %v304, 0.0
  %312 = vset.pattern.permute.xlu0 0
  %313 = vperm.xlu0 %312, %v59
  %v314 = vpop.permute.xlu0 %313
  %317 = vset.pattern.permute.xlu0 0
  %318 = vperm.xlu0 %317, %v60
  %v319 = vpop.permute.xlu0 %318
  %322 = vset.pattern.permute.xlu0 0
  %323 = vperm.xlu0 %322, %v61
  %v324 = vpop.permute.xlu0 %323
  %327 = vset.pattern.permute.xlu0 0
  %328 = vperm.xlu0 %327, %v62
  %v329 = vpop.permute.xlu0 %328
  %v332 = vsel %vm209, %v55, 0
  %v335 = vsel %vm209, %v56, 0
  %v338 = vsel %vm209, %v57, 0
  %v341 = vsel %vm209, %v58, 0
  %343 = vmatprep.subr.mxu0 0.0
  %344 = vmatpush1.msra.mxu0 0.0
  %345 = vmatprep.subr.mxu0 0.0
  %346 = vmatpush1.msra.mxu0 0.0
  %347 = vmatprep.subr.mxu0 0.0
  %348 = vmatpush1.msra.mxu0 0.0
  %349 = vmatprep.subr.mxu0 0.0
  %350 = vmatpush1.msra.mxu0 0.0
  %351 = vmatprep.subr.mxu0 0.0
  %352 = vmatpush1.msra.mxu0 0.0
  %353 = vmatprep.subr.mxu0 0.0
  %354 = vmatpush1.msra.mxu0 0.0
  %355 = vmatprep.subr.mxu0 0.0
  %356 = vmatpush1.msra.mxu0 0.0
  %357 = vmatprep.subr.mxu0 0.0
  %358 = vmatpush1.msra.mxu0 0.0
  %359 = vmatprep.subr.mxu0 0.0
  %360 = vmatpush1.msra.mxu0 0.0
  %361 = vmatprep.subr.mxu0 0.0
  %362 = vmatpush1.msra.mxu0 0.0
  %363 = vmatprep.subr.mxu0 0.0
  %364 = vmatpush1.msra.mxu0 0.0
  %365 = vmatprep.subr.mxu0 0.0
  %366 = vmatpush1.msra.mxu0 0.0
  %367 = vmatprep.subr.mxu0 0.0
  %368 = vmatpush1.msra.mxu0 %v310
  %369 = vmatprep.subr.mxu0 0.0
  %370 = vmatpush1.msra.mxu0 %v309
  %371 = vmatprep.subr.mxu0 0.0
  %372 = vmatpush1.msra.mxu0 %v308
  %373 = vmatprep.subr.mxu0 0.0
  %374 = vmatpush1.msra.mxu0 %v307
  %375 = vmatprep.subr.mxu0 0.0
  %376 = vmatpush2.msra.mxu0 0.0
  %377 = vmatprep.subr.mxu0 0.0
  %378 = vmatpush2.msra.mxu0 0.0
  %379 = vmatprep.subr.mxu0 0.0
  %380 = vmatpush2.msra.mxu0 0.0
  %381 = vmatprep.subr.mxu0 0.0
  %382 = vmatpush2.msra.mxu0 0.0
  %383 = vmatprep.subr.mxu0 0.0
  %384 = vmatpush2.msra.mxu0 0.0
  %385 = vmatprep.subr.mxu0 0.0
  %386 = vmatpush2.msra.mxu0 0.0
  %387 = vmatprep.subr.mxu0 0.0
  %388 = vmatpush2.msra.mxu0 0.0
  %389 = vmatprep.subr.mxu0 0.0
  %390 = vmatpush2.msra.mxu0 0.0
  %391 = vmatprep.subr.mxu0 0.0
  %392 = vmatpush2.msra.mxu0 0.0
  %393 = vmatprep.subr.mxu0 0.0
  %394 = vmatpush2.msra.mxu0 0.0
  %395 = vmatprep.subr.mxu0 0.0
  %396 = vmatpush2.msra.mxu0 0.0
  %397 = vmatprep.subr.mxu0 0.0
  %398 = vmatpush2.msra.mxu0 0.0
  %399 = vmatprep.subr.mxu0 0.0
  %400 = vmatpush2.msra.mxu0 0.0
  %401 = vmatprep.subr.mxu0 0.0
  %402 = vmatpush2.msra.mxu0 0.0
  %403 = vmatprep.subr.mxu0 0.0
  %404 = vmatpush2.msra.mxu0 0.0
  %405 = vmatprep.subr.mxu0 0.0
  %406 = vmatpush2.msra.mxu0 0.0
  %407 = vmatprep.mubr.f32.mxu0 0.0
  %408 = vmatmul.mubr.f32.gmra.mxu0 %v332
  %v409 = vpop.f32.mrf.mxu0
  %v410 = vadd.f32 %v314, %v409
  %v411 = vpop.f32.mrf.mxu0
  %412 = vmatprep.mubr.f32.mxu0 0.0
  %413 = vmatmul.mubr.f32.gmra.mxu0 %v335
  %v414 = vpop.f32.mrf.mxu0
  %v415 = vadd.f32 %v319, %v414
  %v416 = vpop.f32.mrf.mxu0
  %417 = vmatprep.mubr.f32.mxu0 0.0
  %418 = vmatmul.mubr.f32.gmra.mxu0 %v338
  %v419 = vpop.f32.mrf.mxu0
  %v420 = vadd.f32 %v324, %v419
  %v421 = vpop.f32.mrf.mxu0
  %422 = vmatprep.mubr.f32.mxu0 0.0
  %423 = vmatmul.mubr.f32.gmra.mxu0 %v341
  %v424 = vpop.f32.mrf.mxu0
  %v425 = vadd.f32 %v329, %v424
  %v426 = vpop.f32.mrf.mxu0
  %427 = vdwg.mxu0
  %v428 = vmax.f32 %v410, 0.0
  %v429 = vmax.f32 %v415, 0.0
  %v430 = vmax.f32 %v420, 0.0
  %v431 = vmax.f32 %v425, 0.0
  %433 = vset.pattern.permute.xlu0 0
  %434 = vperm.xlu0 %433, %v64
  %v435 = vpop.permute.xlu0 %434
  %v438 = vsel %vm209, %v63, 0
  %440 = vmatprep.subr.mxu0 0.0
  %441 = vmatpush1.msra.mxu0 0.0
  %442 = vmatprep.subr.mxu0 0.0
  %443 = vmatpush1.msra.mxu0 0.0
  %444 = vmatprep.subr.mxu0 0.0
  %445 = vmatpush1.msra.mxu0 0.0
  %446 = vmatprep.subr.mxu0 0.0
  %447 = vmatpush1.msra.mxu0 0.0
  %448 = vmatprep.subr.mxu0 0.0
  %449 = vmatpush1.msra.mxu0 0.0
  %450 = vmatprep.subr.mxu0 0.0
  %451 = vmatpush1.msra.mxu0 0.0
  %452 = vmatprep.subr.mxu0 0.0
  %453 = vmatpush1.msra.mxu0 0.0
  %454 = vmatprep.subr.mxu0 0.0
  %455 = vmatpush1.msra.mxu0 0.0
  %456 = vmatprep.subr.mxu0 0.0
  %457 = vmatpush1.msra.mxu0 0.0
  %458 = vmatprep.subr.mxu0 0.0
  %459 = vmatpush1.msra.mxu0 0.0
  %460 = vmatprep.subr.mxu0 0.0
  %461 = vmatpush1.msra.mxu0 0.0
  %462 = vmatprep.subr.mxu0 0.0
  %463 = vmatpush1.msra.mxu0 0.0
  %464 = vmatprep.subr.mxu0 0.0
  %465 = vmatpush1.msra.mxu0 %v431
  %466 = vmatprep.subr.mxu0 0.0
  %467 = vmatpush1.msra.mxu0 %v430
  %468 = vmatprep.subr.mxu0 0.0
  %469 = vmatpush1.msra.mxu0 %v429
  %470 = vmatprep.subr.mxu0 0.0
  %471 = vmatpush1.msra.mxu0 %v428
  %472 = vmatprep.subr.mxu0 0.0
  %473 = vmatpush2.msra.mxu0 0.0
  %474 = vmatprep.subr.mxu0 0.0
  %475 = vmatpush2.msra.mxu0 0.0
  %476 = vmatprep.subr.mxu0 0.0
  %477 = vmatpush2.msra.mxu0 0.0
  %478 = vmatprep.subr.mxu0 0.0
  %479 = vmatpush2.msra.mxu0 0.0
  %480 = vmatprep.subr.mxu0 0.0
  %481 = vmatpush2.msra.mxu0 0.0
  %482 = vmatprep.subr.mxu0 0.0
  %483 = vmatpush2.msra.mxu0 0.0
  %484 = vmatprep.subr.mxu0 0.0
  %485 = vmatpush2.msra.mxu0 0.0
  %486 = vmatprep.subr.mxu0 0.0
  %487 = vmatpush2.msra.mxu0 0.0
  %488 = vmatprep.subr.mxu0 0.0
  %489 = vmatpush2.msra.mxu0 0.0
  %490 = vmatprep.subr.mxu0 0.0
  %491 = vmatpush2.msra.mxu0 0.0
  %492 = vmatprep.subr.mxu0 0.0
  %493 = vmatpush2.msra.mxu0 0.0
  %494 = vmatprep.subr.mxu0 0.0
  %495 = vmatpush2.msra.mxu0 0.0
  %496 = vmatprep.subr.mxu0 0.0
  %497 = vmatpush2.msra.mxu0 0.0
  %498 = vmatprep.subr.mxu0 0.0
  %499 = vmatpush2.msra.mxu0 0.0
  %500 = vmatprep.subr.mxu0 0.0
  %501 = vmatpush2.msra.mxu0 0.0
  %502 = vmatprep.subr.mxu0 0.0
  %503 = vmatpush2.msra.mxu0 0.0
  %504 = vmatprep.mubr.f32.mxu0 0.0
  %505 = vmatmul.mubr.f32.gmra.mxu0 %v438
  %v506 = vpop.f32.mrf.mxu0
  %v507 = vadd.f32 %v435, %v506
  %v508 = vpop.f32.mrf.mxu0
  %509 = vdwg.mxu0
  %v510 = vmax.f32 %v507, 0.0
  %v511 = vand.u32 2147483647, %v507
  %v512 = vsub.f32 0.0, %v511
  %v513 = vmul.f32 %v512, 1.442695
  %v514 = vpow.pop %v513
  %v515 = vadd.f32 %v514, 1.0
  %v516 = vlog2.pop %v515
  %v517 = vmul.f32 %v516, 0.6931472
  %v518 = vmul.f32 -0.5, %v514
  %v519 = vadd.f32 %v518, 1.0
  %v520 = vmul.f32 %v519, %v514
  %v521 = vand.u32 2147483647, %v514
  %vm522 = vcmp.lt.f32.partialorder %v521, 0.0004427343
  %v523 = vsel %vm522, %v520, %v517
  %v524 = vadd.f32 %v510, %v523
  %v525 = vadd.f32 %v524, 1.05
  %527 = vset.pattern.permute.xlu0 0
  %528 = vperm.xlu0 %527, %v66
  %v529 = vpop.permute.xlu0 %528
  %v532 = vsel %vm209, %v65, 0
  %534 = vmatprep.subr.mxu0 0.0
  %535 = vmatpush1.msra.mxu0 0.0
  %536 = vmatprep.subr.mxu0 0.0
  %537 = vmatpush1.msra.mxu0 0.0
  %538 = vmatprep.subr.mxu0 0.0
  %539 = vmatpush1.msra.mxu0 0.0
  %540 = vmatprep.subr.mxu0 0.0
  %541 = vmatpush1.msra.mxu0 0.0
  %542 = vmatprep.subr.mxu0 0.0
  %543 = vmatpush1.msra.mxu0 0.0
  %544 = vmatprep.subr.mxu0 0.0
  %545 = vmatpush1.msra.mxu0 0.0
  %546 = vmatprep.subr.mxu0 0.0
  %547 = vmatpush1.msra.mxu0 0.0
  %548 = vmatprep.subr.mxu0 0.0
  %549 = vmatpush1.msra.mxu0 0.0
  %550 = vmatprep.subr.mxu0 0.0
  %551 = vmatpush1.msra.mxu0 0.0
  %552 = vmatprep.subr.mxu0 0.0
  %553 = vmatpush1.msra.mxu0 0.0
  %554 = vmatprep.subr.mxu0 0.0
  %555 = vmatpush1.msra.mxu0 0.0
  %556 = vmatprep.subr.mxu0 0.0
  %557 = vmatpush1.msra.mxu0 0.0
  %558 = vmatprep.subr.mxu0 0.0
  %559 = vmatpush1.msra.mxu0 %v431
  %560 = vmatprep.subr.mxu0 0.0
  %561 = vmatpush1.msra.mxu0 %v430
  %562 = vmatprep.subr.mxu0 0.0
  %563 = vmatpush1.msra.mxu0 %v429
  %564 = vmatprep.subr.mxu0 0.0
  %565 = vmatpush1.msra.mxu0 %v428
  %566 = vmatprep.subr.mxu0 0.0
  %567 = vmatpush2.msra.mxu0 0.0
  %568 = vmatprep.subr.mxu0 0.0
  %569 = vmatpush2.msra.mxu0 0.0
  %570 = vmatprep.subr.mxu0 0.0
  %571 = vmatpush2.msra.mxu0 0.0
  %572 = vmatprep.subr.mxu0 0.0
  %573 = vmatpush2.msra.mxu0 0.0
  %574 = vmatprep.subr.mxu0 0.0
  %575 = vmatpush2.msra.mxu0 0.0
  %576 = vmatprep.subr.mxu0 0.0
  %577 = vmatpush2.msra.mxu0 0.0
  %578 = vmatprep.subr.mxu0 0.0
  %579 = vmatpush2.msra.mxu0 0.0
  %580 = vmatprep.subr.mxu0 0.0
  %581 = vmatpush2.msra.mxu0 0.0
  %582 = vmatprep.subr.mxu0 0.0
  %583 = vmatpush2.msra.mxu0 0.0
  %584 = vmatprep.subr.mxu0 0.0
  %585 = vmatpush2.msra.mxu0 0.0
  %586 = vmatprep.subr.mxu0 0.0
  %587 = vmatpush2.msra.mxu0 0.0
  %588 = vmatprep.subr.mxu0 0.0
  %589 = vmatpush2.msra.mxu0 0.0
  %590 = vmatprep.subr.mxu0 0.0
  %591 = vmatpush2.msra.mxu0 0.0
  %592 = vmatprep.subr.mxu0 0.0
  %593 = vmatpush2.msra.mxu0 0.0
  %594 = vmatprep.subr.mxu0 0.0
  %595 = vmatpush2.msra.mxu0 0.0
  %596 = vmatprep.subr.mxu0 0.0
  %597 = vmatpush2.msra.mxu0 0.0
  %598 = vmatprep.mubr.f32.mxu0 0.0
  %599 = vmatmul.mubr.f32.gmra.mxu0 %v532
  %v600 = vpop.f32.mrf.mxu0
  %v601 = vadd.f32 %v529, %v600
  %v602 = vpop.f32.mrf.mxu0
  %603 = vdwg.mxu0
  %v604 = vmax.f32 %v601, 0.0
  %v605 = vand.u32 2147483647, %v601
  %v606 = vsub.f32 0.0, %v605
  %v607 = vmul.f32 %v606, 1.442695
  %v608 = vpow.pop %v607
  %v609 = vadd.f32 %v608, 1.0
  %v610 = vlog2.pop %v609
  %v611 = vmul.f32 %v610, 0.6931472
  %v612 = vmul.f32 -0.5, %v608
  %v613 = vadd.f32 %v612, 1.0
  %v614 = vmul.f32 %v613, %v608
  %v615 = vand.u32 2147483647, %v608
  %vm616 = vcmp.lt.f32.partialorder %v615, 0.0004427343
  %v617 = vsel %vm616, %v614, %v611
  %v618 = vadd.f32 %v604, %v617
  %v619 = vadd.f32 %v618, 1.05
  %v620 = vadd.f32 %v525, 1.0
  %v621 = vmul.f32 %v525, %v620
  %v622 = vadd.f32 %v525, 2.0
  %v623 = vmul.f32 %v621, %v622
  %v624 = vlog2.pop %v623
  %v625 = vmul.f32 %v624, 0.6931472
  %v626 = vadd.f32 %v525, 3.0
  %v627 = vadd.f32 %v525, 4.0
  %v628 = vmul.f32 %v626, %v627
  %v629 = vadd.f32 %v525, 5.0
  %v630 = vmul.f32 %v628, %v629
  %v631 = vlog2.pop %v630
  %v632 = vmul.f32 %v631, 0.6931472
  %v633 = vadd.f32 %v625, %v632
  %v634 = vadd.f32 %v525, 6.0
  %v635 = vrcp.pop %v634
  %v636 = vmul.f32 %v634, %v635
  %v637 = vsub.f32 2.0, %v636
  %v638 = vmul.f32 %v635, %v637
  %v639 = vmul.f32 %v638, %v638
  %v640 = vmul.f32 %v639, 0.0007936508
  %v641 = vsub.f32 0.0027777778, %v640
  %v642 = vmul.f32 %v639, %v641
  %v643 = vsub.f32 0.083333336, %v642
  %v644 = vmul.f32 %v638, %v643
  %v645 = vsub.f32 %v634, 0.5
  %v646 = vlog2.pop %v634
  %v647 = vmul.f32 %v646, 0.6931472
  %v648 = vmul.f32 %v645, %v647
  %v649 = vsub.f32 %v648, %v634
  %v650 = vadd.f32 %v649, 0.9189385
  %v651 = vadd.f32 %v650, %v644
  %v652 = vsub.f32 %v651, %v633
  %v653 = vadd.f32 %v619, 1.0
  %v654 = vmul.f32 %v619, %v653
  %v655 = vadd.f32 %v619, 2.0
  %v656 = vmul.f32 %v654, %v655
  %v657 = vlog2.pop %v656
  %v658 = vmul.f32 %v657, 0.6931472
  %v659 = vadd.f32 %v619, 3.0
  %v660 = vadd.f32 %v619, 4.0
  %v661 = vmul.f32 %v659, %v660
  %v662 = vadd.f32 %v619, 5.0
  %v663 = vmul.f32 %v661, %v662
  %v664 = vlog2.pop %v663
  %v665 = vmul.f32 %v664, 0.6931472
  %v666 = vadd.f32 %v658, %v665
  %v667 = vadd.f32 %v619, 6.0
  %v668 = vrcp.pop %v667
  %v669 = vmul.f32 %v667, %v668
  %v670 = vsub.f32 2.0, %v669
  %v671 = vmul.f32 %v668, %v670
  %v672 = vmul.f32 %v671, %v671
  %v673 = vmul.f32 %v672, 0.0007936508
  %v674 = vsub.f32 0.0027777778, %v673
  %v675 = vmul.f32 %v672, %v674
  %v676 = vsub.f32 0.083333336, %v675
  %v677 = vmul.f32 %v671, %v676
  %v678 = vsub.f32 %v667, 0.5
  %v679 = vlog2.pop %v667
  %v680 = vmul.f32 %v679, 0.6931472
  %v681 = vmul.f32 %v678, %v680
  %v682 = vsub.f32 %v681, %v667
  %v683 = vadd.f32 %v682, 0.9189385
  %v684 = vadd.f32 %v683, %v677
  %v685 = vsub.f32 %v684, %v666
  %v686 = vadd.f32 %v652, %v685
  %v687 = vadd.f32 %v525, %v619
  %v688 = vadd.f32 %v687, 1.0
  %v689 = vmul.f32 %v687, %v688
  %v690 = vadd.f32 %v687, 2.0
  %v691 = vmul.f32 %v689, %v690
  %v692 = vlog2.pop %v691
  %v693 = vmul.f32 %v692, 0.6931472
  %v694 = vadd.f32 %v687, 3.0
  %v695 = vadd.f32 %v687, 4.0
  %v696 = vmul.f32 %v694, %v695
  %v697 = vadd.f32 %v687, 5.0
  %v698 = vmul.f32 %v696, %v697
  %v699 = vlog2.pop %v698
  %v700 = vmul.f32 %v699, 0.6931472
  %v701 = vadd.f32 %v693, %v700
  %v702 = vadd.f32 %v687, 6.0
  %v703 = vrcp.pop %v702
  %v704 = vmul.f32 %v702, %v703
  %v705 = vsub.f32 2.0, %v704
  %v706 = vmul.f32 %v703, %v705
  %v707 = vmul.f32 %v706, %v706
  %v708 = vmul.f32 %v707, 0.0007936508
  %v709 = vsub.f32 0.0027777778, %v708
  %v710 = vmul.f32 %v707, %v709
  %v711 = vsub.f32 0.083333336, %v710
  %v712 = vmul.f32 %v706, %v711
  %v713 = vsub.f32 %v702, 0.5
  %v714 = vlog2.pop %v702
  %v715 = vmul.f32 %v714, 0.6931472
  %v716 = vmul.f32 %v713, %v715
  %v717 = vsub.f32 %v716, %v702
  %v718 = vadd.f32 %v717, 0.9189385
  %v719 = vadd.f32 %v718, %v712
  %v720 = vsub.f32 %v719, %v701
  %v721 = vsub.f32 %v686, %v720
  %v722 = vsub.f32 %v525, 1.0
  %v723 = vrcp.pop %v525
  %v724 = vmul.f32 %v525, %v723
  %v725 = vsub.f32 2.0, %v724
  %v726 = vmul.f32 %v723, %v725
  %v727 = vrcp.pop %v620
  %v728 = vmul.f32 %v620, %v727
  %v729 = vsub.f32 2.0, %v728
  %v730 = vmul.f32 %v727, %v729
  %v731 = vadd.f32 %v726, %v730
  %v732 = vrcp.pop %v622
  %v733 = vmul.f32 %v622, %v732
  %v734 = vsub.f32 2.0, %v733
  %v735 = vmul.f32 %v732, %v734
  %v736 = vadd.f32 %v731, %v735
  %v737 = vrcp.pop %v626
  %v738 = vmul.f32 %v626, %v737
  %v739 = vsub.f32 2.0, %v738
  %v740 = vmul.f32 %v737, %v739
  %v741 = vadd.f32 %v736, %v740
  %v742 = vrcp.pop %v627
  %v743 = vmul.f32 %v627, %v742
  %v744 = vsub.f32 2.0, %v743
  %v745 = vmul.f32 %v742, %v744
  %v746 = vadd.f32 %v741, %v745
  %v747 = vrcp.pop %v629
  %v748 = vmul.f32 %v629, %v747
  %v749 = vsub.f32 2.0, %v748
  %v750 = vmul.f32 %v747, %v749
  %v751 = vadd.f32 %v746, %v750
  %v752 = vmul.f32 %v639, 0.003968254
  %v753 = vsub.f32 0.008333334, %v752
  %v754 = vmul.f32 %v639, %v753
  %v755 = vsub.f32 0.083333336, %v754
  %v756 = vmul.f32 %v639, %v755
  %v757 = vmul.f32 %v638, 0.5
  %v758 = vsub.f32 %v647, %v757
  %v759 = vsub.f32 %v758, %v756
  %v760 = vsub.f32 %v759, %v751
  %v761 = vmul.f32 %v722, %v760
  %v762 = vsub.f32 %v721, %v761
  %v763 = vsub.f32 %v619, 1.0
  %v764 = vrcp.pop %v619
  %v765 = vmul.f32 %v619, %v764
  %v766 = vsub.f32 2.0, %v765
  %v767 = vmul.f32 %v764, %v766
  %v768 = vrcp.pop %v653
  %v769 = vmul.f32 %v653, %v768
  %v770 = vsub.f32 2.0, %v769
  %v771 = vmul.f32 %v768, %v770
  %v772 = vadd.f32 %v767, %v771
  %v773 = vrcp.pop %v655
  %v774 = vmul.f32 %v655, %v773
  %v775 = vsub.f32 2.0, %v774
  %v776 = vmul.f32 %v773, %v775
  %v777 = vadd.f32 %v772, %v776
  %v778 = vrcp.pop %v659
  %v779 = vmul.f32 %v659, %v778
  %v780 = vsub.f32 2.0, %v779
  %v781 = vmul.f32 %v778, %v780
  %v782 = vadd.f32 %v777, %v781
  %v783 = vrcp.pop %v660
  %v784 = vmul.f32 %v660, %v783
  %v785 = vsub.f32 2.0, %v784
  %v786 = vmul.f32 %v783, %v785
  %v787 = vadd.f32 %v782, %v786
  %v788 = vrcp.pop %v662
  %v789 = vmul.f32 %v662, %v788
  %v790 = vsub.f32 2.0, %v789
  %v791 = vmul.f32 %v788, %v790
  %v792 = vadd.f32 %v787, %v791
  %v793 = vmul.f32 %v672, 0.003968254
  %v794 = vsub.f32 0.008333334, %v793
  %v795 = vmul.f32 %v672, %v794
  %v796 = vsub.f32 0.083333336, %v795
  %v797 = vmul.f32 %v672, %v796
  %v798 = vmul.f32 %v671, 0.5
  %v799 = vsub.f32 %v680, %v798
  %v800 = vsub.f32 %v799, %v797
  %v801 = vsub.f32 %v800, %v792
  %v802 = vmul.f32 %v763, %v801
  %v803 = vsub.f32 %v762, %v802
  %v804 = vsub.f32 %v687, 2.0
  %v805 = vrcp.pop %v687
  %v806 = vmul.f32 %v687, %v805
  %v807 = vsub.f32 2.0, %v806
  %v808 = vmul.f32 %v805, %v807
  %v809 = vrcp.pop %v688
  %v810 = vmul.f32 %v688, %v809
  %v811 = vsub.f32 2.0, %v810
  %v812 = vmul.f32 %v809, %v811
  %v813 = vadd.f32 %v808, %v812
  %v814 = vrcp.pop %v690
  %v815 = vmul.f32 %v690, %v814
  %v816 = vsub.f32 2.0, %v815
  %v817 = vmul.f32 %v814, %v816
  %v818 = vadd.f32 %v813, %v817
  %v819 = vrcp.pop %v694
  %v820 = vmul.f32 %v694, %v819
  %v821 = vsub.f32 2.0, %v820
  %v822 = vmul.f32 %v819, %v821
  %v823 = vadd.f32 %v818, %v822
  %v824 = vrcp.pop %v695
  %v825 = vmul.f32 %v695, %v824
  %v826 = vsub.f32 2.0, %v825
  %v827 = vmul.f32 %v824, %v826
  %v828 = vadd.f32 %v823, %v827
  %v829 = vrcp.pop %v697
  %v830 = vmul.f32 %v697, %v829
  %v831 = vsub.f32 2.0, %v830
  %v832 = vmul.f32 %v829, %v831
  %v833 = vadd.f32 %v828, %v832
  %v834 = vmul.f32 %v707, 0.003968254
  %v835 = vsub.f32 0.008333334, %v834
  %v836 = vmul.f32 %v707, %v835
  %v837 = vsub.f32 0.083333336, %v836
  %v838 = vmul.f32 %v707, %v837
  %v839 = vmul.f32 %v706, 0.5
  %v840 = vsub.f32 %v715, %v839
  %v841 = vsub.f32 %v840, %v838
  %v842 = vsub.f32 %v841, %v833
  %v843 = vmul.f32 %v804, %v842
  %v844 = vadd.f32 %v803, %v843
  %v845 = vrcp.pop %v804
  %v846 = vmul.f32 %v804, %v845
  %v847 = vsub.f32 2.0, %v846
  %v848 = vmul.f32 %v845, %v847
  %v849 = vmul.f32 %v722, %v848
  %v850 = vsub.f32 %v849, 0.5
  %v851 = vmul.f32 %v850, 2.0
  %vm852 = vcmask 58368
  %853 = vst.msk [vmem:[%s11] sm:$0x3] %vm852, %v851
  %854 = vst.msk [vmem:[%s11 + $0x2] sm:$0x3] %vm852, %v849
  %v855 = vmax.f32 %v849, 1e-06
  %v856 = vmin.f32 %v855, 0.999999
  %v857 = vlog2.pop %v856
  %v858 = vmul.f32 %v857, 0.6931472
  %v859 = vmul.f32 %v722, %v858
  %v860 = vsub.f32 0.0, %v856
  %v861 = vadd.f32 %v860, 1.0
  %v862 = vlog2.pop %v861
  %v863 = vmul.f32 %v862, 0.6931472
  %v864 = vmul.f32 -0.5, %v860
  %v865 = vadd.f32 %v864, 1.0
  %v866 = vmul.f32 %v865, %v860
  %v867 = vand.u32 2147483647, %v860
  %vm868 = vcmp.lt.f32.partialorder %v867, 0.0004427343
  %v869 = vsel %vm868, %v866, %v863
  %v870 = vmul.f32 %v763, %v869
  %v871 = vadd.f32 %v859, %v870
  %v872 = vsub.f32 %v871, %v721
  %873 = vst.msk [vmem:[%s11 + $0x4] sm:$0x3] %vm852, %v872
  %v874 = vsel %vm852, %v844, 0.0
  %v875 = vrot.slane %v874, 4
  %v876 = vadd.f32 %v874, %v875
  %v877 = vrot.slane %v876, 2
  %v878 = vadd.f32 %v876, %v877
  %v879 = vrot.slane %v878, 1
  %v880 = vadd.f32 %v878, %v879
  %v881 = vrcp.pop 2.0
  %v882 = vmul.f32 %v880, %v881
  %v883 = vsub.f32 0.0, %v882
  %vm884 = vcmask 57344
  %885 = vst.msk [vmem:[%s11 + $0x6] sm:$0x1] %vm884, %v883
  // Predicated region
  $region46: #{_lambda_.1} parent=0 // pred_check
    _
  $region47: #{_lambda_.1} parent=0 // pred_check_branch
    %887 = sbr.rel (0) target = $region49
  $region48: #{_lambda_.1} parent=0 // pred_region
    _
  $region49: #{_lambda_.1} parent=0 // pred_fallthru
    _
  // Predicated region
  $region50: #{_lambda_.1} parent=0 // pred_check
    _
  $region51: #{_lambda_.1} parent=0 // pred_check_branch
    %889 = sbr.rel (0) target = $region53
  $region52: #{_lambda_.1} parent=0 // pred_region
    _
  $region53: #{_lambda_.1} parent=0 // pred_fallthru
    _

</llo_original>
